<compile_context>
chip_gen: v7x
topology: tpu7x:2x2x1
jax: 0.10.0
libtpu: 0.0.40
codegen_flags: <defaults>
</compile_context>

<pallas_src>
import functools

import jax
import jax.numpy as jnp
from jax import lax
from jax.experimental import pallas as pl
from jax.experimental.pallas import tpu as pltpu

LEAKY_ALPHA = 0.2  # BGATLayer(alpha=0.2) -> nn.LeakyReLU(0.2)


def head_kernel(x_ref, wfc_ref, bfc_ref, mask_ref, scal_ref, out_ref, acc_ref,
                *, csub: int, alpha: float):
    # x_ref   : (bt, tk, HW) VMEM  — one batch tile x one C chunk of NCHW x
    # wfc_ref : (tk, N)      VMEM  — matching K slab of fc weight (y = pooled @ wfc + bfc)
    # bfc_ref : (1, N)       VMEM
    # mask_ref: (N, N)       VMEM  — 0/1 correlation mask
    # scal_ref: (4,)         SMEM  — [gat_W, gat_a0, gat_a1, beta]
    # out_ref : (bt, N)      VMEM  — resident across the C-chunk axis
    # acc_ref : (bt, N)      VMEM scratch (fc accumulator)
    tk = x_ref.shape[1]
    nsub = tk // csub
    k = pl.program_id(1)

    @pl.when(k == 0)
    def _init():
        acc_ref[...] = jnp.zeros_like(acc_ref)

    # Streamed global max-pool fused with the FC K-accumulation: process the
    # C chunk in `csub` sub-chunks so only (bt, csub, HW) is live at a time.
    def body(i, part):
        i0 = pl.multiple_of(i * csub, csub)
        xs = x_ref[:, pl.ds(i0, csub), :]                  # (bt, csub, HW)
        pooled = jnp.max(xs, axis=-1)                      # (bt, csub)
        ws = wfc_ref[pl.ds(i0, csub), :]                   # (csub, N)
        return part + jnp.dot(pooled, ws, preferred_element_type=jnp.float32)

    acc_ref[...] += lax.fori_loop(
        0, nsub, body, jnp.zeros(acc_ref.shape, acc_ref.dtype), unroll=True)

    # GAT epilogue only on the last reduction step.
    @pl.when(k == pl.num_programs(1) - 1)
    def _epilogue():
        s = acc_ref[...] + bfc_ref[...]                    # (bt, N) fc output
        w = scal_ref[0]
        a0 = scal_ref[1]
        a1 = scal_ref[2]
        beta = scal_ref[3]

        h = s * w                                          # h = x @ W (in=out=1)
        # e[b,i,j] = LeakyReLU(a0*h[b,i] + a1*h[b,j])
        e = a0 * h[:, :, None] + a1 * h[:, None, :]        # (bt, N, N)
        e = jnp.where(e > 0, e, alpha * e)
        # attention = e * mask (masked entries still join the softmax, as in torch)
        att = e * mask_ref[...][None, :, :]
        att = att - jnp.max(att, axis=-1, keepdims=True)
        p = jnp.exp(att)
        p = p * pl.reciprocal(jnp.sum(p, axis=-1, keepdims=True), approx=False)
        # dropout(p=0) is a no-op.
        h_prime = jnp.sum(p * h[:, None, :], axis=-1)      # bmm(attention, h)
        g = h_prime + beta * h
        g = jnp.where(g > 0, g, jnp.exp(jnp.minimum(g, 0.0)) - 1.0)  # ELU (clamped exp)

        out_ref[...] = s + g                               # Head residual


def _pick_bt(B: int) -> int:
    # Batch tile: keep the output block's second-minor dim either a multiple of
    # 8 or the full batch (tile legality), preferring >= 2 grid steps so the
    # "parallel" axis can be sharded across TensorCores (v7x megacore).
    if B % 8 == 0:
        for cand in (256, 128, 64, 32, 16, 8):
            if B % cand == 0 and B // cand >= 2:
                return cand
        return 8
    return B


def head_forward(x_nchw, wfc, bfc, mask, gat_scalars, *, tk=512, csub=128, bt=None):
    B, C, H, W = x_nchw.shape
    N = wfc.shape[1]
    HW = H * W

    # Free contiguous view of NCHW — no transpose / extra HBM pass.
    x = x_nchw.reshape(B, C, HW)

    if bt is None:
        bt = _pick_bt(B)
    tk = min(tk, C)
    csub = min(csub, tk)
    assert B % bt == 0 and C % tk == 0 and tk % csub == 0

    grid = (B // bt, C // tk)  # (parallel batch tiles, C reduction chunks)
    kernel = functools.partial(head_kernel, csub=csub, alpha=LEAKY_ALPHA)

    out = pl.pallas_call(
        kernel,
        out_shape=jax.ShapeDtypeStruct((B, N), jnp.float32),
        grid_spec=pltpu.PrefetchScalarGridSpec(
            num_scalar_prefetch=0,
            grid=grid,
            in_specs=[
                pl.BlockSpec((bt, tk, HW), lambda b, k: (b, k, 0)),   # x
                pl.BlockSpec((tk, N), lambda b, k: (k, 0)),           # fc weight slab
                pl.BlockSpec((1, N), lambda b, k: (0, 0)),            # fc bias
                pl.BlockSpec((N, N), lambda b, k: (0, 0)),            # GAT mask
                pl.BlockSpec(memory_space=pltpu.MemorySpace.SMEM),    # packed scalars
            ],
            out_specs=pl.BlockSpec((bt, N), lambda b, k: (b, 0)),
            scratch_shapes=[pltpu.VMEM((bt, N), jnp.float32)],
        ),
        compiler_params=pltpu.CompilerParams(
            dimension_semantics=("parallel", "arbitrary")),
    )(x, wfc, bfc, mask, gat_scalars)
    return out


def head_reference(x_nchw, wfc, bfc, mask, gat_scalars):
    """Pure-JAX reference mirroring the PyTorch forward."""
    B, C, H, W = x_nchw.shape
    pooled = jnp.max(x_nchw.reshape(B, C, H * W), axis=-1)          # (B, C)
    s = pooled @ wfc + bfc                                          # (B, N)
    w, a0, a1, beta = gat_scalars
    h = s * w
    e = a0 * h[:, :, None] + a1 * h[:, None, :]
    e = jnp.where(e > 0, e, LEAKY_ALPHA * e)
    att = jax.nn.softmax(e * mask[None], axis=-1)
    h_prime = jnp.einsum('bij,bj->bi', att, h)
    return s + jax.nn.elu(h_prime + beta * h)


if __name__ == "__main__":
    B, C, H, W = 2, 2048, 4, 4   # fc in the module is hard-coded to 2048 inputs
    N = 16                       # nclasses

    key = jax.random.PRNGKey(0)
    kx, kw, kb, kgw, kga, km = jax.random.split(key, 6)

    x = jax.random.normal(kx, (B, C, H, W), dtype=jnp.float32)

    # fc: Linear(2048, N).  Stored as (C, N) so the kernel does pooled @ wfc + bfc.
    wfc = (jax.random.normal(kw, (C, N), dtype=jnp.float32) * 0.02).astype(jnp.float32)
    bfc = (jax.random.normal(kb, (1, N), dtype=jnp.float32) * 0.01).astype(jnp.float32)

    # BGATLayer params: W (1,1) and a (2,1) xavier_uniform(gain=1.414), beta = 1.
    xav_w = 1.414 * (6.0 / (1 + 1)) ** 0.5
    xav_a = 1.414 * (6.0 / (2 + 1)) ** 0.5
    gat_w = jax.random.uniform(kgw, (1,), minval=-xav_w, maxval=xav_w, dtype=jnp.float32)
    gat_a = jax.random.uniform(kga, (2,), minval=-xav_a, maxval=xav_a, dtype=jnp.float32)
    gat_beta = jnp.ones((1,), dtype=jnp.float32)
    # Pack [W, a0, a1, beta] into a single SMEM operand.
    gat_scalars = jnp.concatenate([gat_w, gat_a, gat_beta]).astype(jnp.float32)  # (4,)

    # TODO(synk): coco_correlations.pkl is a checkpoint-style artifact; synthesize a
    # deterministic 0/1 correlation mask (corr > 0.1) in-script instead of loading it.
    corr = jax.random.uniform(km, (N, N), dtype=jnp.float32)
    mask = (corr > 0.1).astype(jnp.float32)

    out = jax.jit(head_forward)(x, wfc, bfc, mask, gat_scalars)
    out = jax.block_until_ready(out)

    ref = head_reference(x, wfc, bfc, mask, gat_scalars)
    assert out.shape == (B, N)
    # split-K accumulation order differs from the monolithic reference dot
    assert jnp.allclose(out, ref, atol=1e-3, rtol=1e-3), "mismatch vs JAX reference"

    print("KERNEL_OK")
</pallas_src>

<mosaic_0001>
module attributes {stable_mosaic.version = 11 : i64} {
  func.func @head_kernel(%arg0: i32, %arg1: i32, %arg2: memref<2x512x16xf32, #tpu.memory_space<vmem>>, %arg3: memref<512x16xf32, #tpu.memory_space<vmem>>, %arg4: memref<1x16xf32, #tpu.memory_space<vmem>>, %arg5: memref<16x16xf32, #tpu.memory_space<vmem>>, %arg6: memref<4xf32, #tpu.memory_space<smem>>, %arg7: memref<2x16xf32, #tpu.memory_space<vmem>>, %arg8: memref<2x16xf32, #tpu.memory_space<vmem>>) attributes {dimension_semantics = [#tpu.dimension_semantics<parallel>, #tpu.dimension_semantics<arbitrary>], iteration_bounds = array<i64: 1, 4>, scalar_prefetch = 0 : i64, scratch_operands = 1 : i64, tpu.core_type = #tpu.core_type<tc>, window_params = [{transform_indices = @transform_0, window_bounds = array<i64: 2, 512, 16>}, {transform_indices = @transform_1, window_bounds = array<i64: 512, 16>}, {pipeline_mode = #tpu.pipeline_mode<synchronous>, transform_indices = @transform_2, window_bounds = array<i64: 1, 16>}, {pipeline_mode = #tpu.pipeline_mode<synchronous>, transform_indices = @transform_3, window_bounds = array<i64: 16, 16>}, {transform_indices = @transform_4, window_bounds = array<i64: 4>}, {transform_indices = @transform_5, window_bounds = array<i64: 2, 16>}]} {
    %c0_i32 = arith.constant 0 : i32
    %0 = arith.cmpi eq, %arg1, %c0_i32 : i32
    %1 = arith.extui %0 : i1 to i32
    %c0_i32_0 = arith.constant 0 : i32
    %2 = arith.cmpi ne, %1, %c0_i32_0 : i32
    scf.if %2 {
      %cst_30 = arith.constant 0.000000e+00 : f32
      %46 = vector.broadcast %cst_30 : f32 to vector<2x16xf32>
      %c0_31 = arith.constant 0 : index
      %c0_32 = arith.constant 0 : index
      %47 = vector.load %arg8[%c0_31, %c0_32] : memref<2x16xf32, #tpu.memory_space<vmem>>, vector<2x16xf32>
      tpu.vector_store %arg8[%c0_31, %c0_32], %46 {strides = array<i32>} : memref<2x16xf32, #tpu.memory_space<vmem>>, vector<2x16xf32>,
    } else {
    }
    %c0 = arith.constant 0 : index
    %c0_1 = arith.constant 0 : index
    %3 = vector.load %arg8[%c0, %c0_1] : memref<2x16xf32, #tpu.memory_space<vmem>>, vector<2x16xf32>
    %cst = arith.constant 0.000000e+00 : f32
    %4 = vector.broadcast %cst : f32 to vector<2x16xf32>
    %c0_i32_2 = arith.constant 0 : i32
    %c128_i32 = arith.constant 128 : i32
    %5 = arith.muli %c0_i32_2, %c128_i32 : i32
    %6 = tpu.assume_multiple %5, 128 : i32
    %c0_3 = arith.constant 0 : index
    %7 = arith.index_cast %6 : i32 to index
    %c0_4 = arith.constant 0 : index
    %8 = vector.load %arg2[%c0_3, %7, %c0_4] : memref<2x512x16xf32, #tpu.memory_space<vmem>>, vector<2x128x16xf32>
    %cst_5 = arith.constant dense<0xFF800000> : vector<2x128xf32>
    %9 = vector.multi_reduction <maximumf>, %8, %cst_5 [2] : vector<2x128x16xf32> to vector<2x128xf32>
    %10 = arith.index_cast %6 : i32 to index
    %c0_6 = arith.constant 0 : index
    %11 = vector.load %arg3[%10, %c0_6] : memref<512x16xf32, #tpu.memory_space<vmem>>, vector<128x16xf32>
    %cst_7 = arith.constant dense<0.000000e+00> : vector<2x16xf32>
    %12 = tpu.matmul %9, %11, %cst_7 {dimension_numbers = #tpu.dot_dimension_numbers<[1], [0], [0], [1], [0, 0, 1, 1], [], []>} : vector<2x128xf32>, vector<128x16xf32>, vector<2x16xf32> -> vector<2x16xf32>
    %13 = arith.addf %4, %12 : vector<2x16xf32>
    %c1_i32 = arith.constant 1 : i32
    %c128_i32_8 = arith.constant 128 : i32
    %14 = arith.muli %c1_i32, %c128_i32_8 : i32
    %15 = tpu.assume_multiple %14, 128 : i32
    %c0_9 = arith.constant 0 : index
    %16 = arith.index_cast %15 : i32 to index
    %c0_10 = arith.constant 0 : index
    %17 = vector.load %arg2[%c0_9, %16, %c0_10] : memref<2x512x16xf32, #tpu.memory_space<vmem>>, vector<2x128x16xf32>
    %cst_11 = arith.constant dense<0xFF800000> : vector<2x128xf32>
    %18 = vector.multi_reduction <maximumf>, %17, %cst_11 [2] : vector<2x128x16xf32> to vector<2x128xf32>
    %19 = arith.index_cast %15 : i32 to index
    %c0_12 = arith.constant 0 : index
    %20 = vector.load %arg3[%19, %c0_12] : memref<512x16xf32, #tpu.memory_space<vmem>>, vector<128x16xf32>
    %cst_13 = arith.constant dense<0.000000e+00> : vector<2x16xf32>
    %21 = tpu.matmul %18, %20, %cst_13 {dimension_numbers = #tpu.dot_dimension_numbers<[1], [0], [0], [1], [0, 0, 1, 1], [], []>} : vector<2x128xf32>, vector<128x16xf32>, vector<2x16xf32> -> vector<2x16xf32>
    %22 = arith.addf %13, %21 : vector<2x16xf32>
    %c2_i32 = arith.constant 2 : i32
    %c128_i32_14 = arith.constant 128 : i32
    %23 = arith.muli %c2_i32, %c128_i32_14 : i32
    %24 = tpu.assume_multiple %23, 128 : i32
    %c0_15 = arith.constant 0 : index
    %25 = arith.index_cast %24 : i32 to index
    %c0_16 = arith.constant 0 : index
    %26 = vector.load %arg2[%c0_15, %25, %c0_16] : memref<2x512x16xf32, #tpu.memory_space<vmem>>, vector<2x128x16xf32>
    %cst_17 = arith.constant dense<0xFF800000> : vector<2x128xf32>
    %27 = vector.multi_reduction <maximumf>, %26, %cst_17 [2] : vector<2x128x16xf32> to vector<2x128xf32>
    %28 = arith.index_cast %24 : i32 to index
    %c0_18 = arith.constant 0 : index
    %29 = vector.load %arg3[%28, %c0_18] : memref<512x16xf32, #tpu.memory_space<vmem>>, vector<128x16xf32>
    %cst_19 = arith.constant dense<0.000000e+00> : vector<2x16xf32>
    %30 = tpu.matmul %27, %29, %cst_19 {dimension_numbers = #tpu.dot_dimension_numbers<[1], [0], [0], [1], [0, 0, 1, 1], [], []>} : vector<2x128xf32>, vector<128x16xf32>, vector<2x16xf32> -> vector<2x16xf32>
    %31 = arith.addf %22, %30 : vector<2x16xf32>
    %c3_i32 = arith.constant 3 : i32
    %c128_i32_20 = arith.constant 128 : i32
    %32 = arith.muli %c3_i32, %c128_i32_20 : i32
    %33 = tpu.assume_multiple %32, 128 : i32
    %c0_21 = arith.constant 0 : index
    %34 = arith.index_cast %33 : i32 to index
    %c0_22 = arith.constant 0 : index
    %35 = vector.load %arg2[%c0_21, %34, %c0_22] : memref<2x512x16xf32, #tpu.memory_space<vmem>>, vector<2x128x16xf32>
    %cst_23 = arith.constant dense<0xFF800000> : vector<2x128xf32>
    %36 = vector.multi_reduction <maximumf>, %35, %cst_23 [2] : vector<2x128x16xf32> to vector<2x128xf32>
    %37 = arith.index_cast %33 : i32 to index
    %c0_24 = arith.constant 0 : index
    %38 = vector.load %arg3[%37, %c0_24] : memref<512x16xf32, #tpu.memory_space<vmem>>, vector<128x16xf32>
    %cst_25 = arith.constant dense<0.000000e+00> : vector<2x16xf32>
    %39 = tpu.matmul %36, %38, %cst_25 {dimension_numbers = #tpu.dot_dimension_numbers<[1], [0], [0], [1], [0, 0, 1, 1], [], []>} : vector<2x128xf32>, vector<128x16xf32>, vector<2x16xf32> -> vector<2x16xf32>
    %40 = arith.addf %31, %39 : vector<2x16xf32>
    %c4_i32 = arith.constant 4 : i32
    %41 = arith.addf %3, %40 : vector<2x16xf32>
    %c0_26 = arith.constant 0 : index
    %c0_27 = arith.constant 0 : index
    %42 = vector.load %arg8[%c0_26, %c0_27] : memref<2x16xf32, #tpu.memory_space<vmem>>, vector<2x16xf32>
    tpu.vector_store %arg8[%c0_26, %c0_27], %41 {strides = array<i32>} : memref<2x16xf32, #tpu.memory_space<vmem>>, vector<2x16xf32>,
    %c3_i32_28 = arith.constant 3 : i32
    %43 = arith.cmpi eq, %arg1, %c3_i32_28 : i32
    %44 = arith.extui %43 : i1 to i32
    %c0_i32_29 = arith.constant 0 : i32
    %45 = arith.cmpi ne, %44, %c0_i32_29 : i32
    scf.if %45 {
      %c0_30 = arith.constant 0 : index
      %c0_31 = arith.constant 0 : index
      %46 = vector.load %arg8[%c0_30, %c0_31] : memref<2x16xf32, #tpu.memory_space<vmem>>, vector<2x16xf32>
      %c0_32 = arith.constant 0 : index
      %c0_33 = arith.constant 0 : index
      %47 = vector.load %arg4[%c0_32, %c0_33] : memref<1x16xf32, #tpu.memory_space<vmem>>, vector<1x16xf32>
      %48 = vector.broadcast %47 : vector<1x16xf32> to vector<2x16xf32>
      %49 = arith.addf %46, %48 : vector<2x16xf32>
      %c0_34 = arith.constant 0 : index
      %50 = memref.load %arg6[%c0_34] : memref<4xf32, #tpu.memory_space<smem>>
      %c1 = arith.constant 1 : index
      %51 = memref.load %arg6[%c1] : memref<4xf32, #tpu.memory_space<smem>>
      %c2 = arith.constant 2 : index
      %52 = memref.load %arg6[%c2] : memref<4xf32, #tpu.memory_space<smem>>
      %c3 = arith.constant 3 : index
      %53 = memref.load %arg6[%c3] : memref<4xf32, #tpu.memory_space<smem>>
      %54 = vector.broadcast %50 : f32 to vector<2x16xf32>
      %55 = arith.mulf %49, %54 : vector<2x16xf32>
      %56 = vector.shape_cast %55 : vector<2x16xf32> to vector<2x16x1xf32>
      %57 = vector.broadcast %51 : f32 to vector<2x16x1xf32>
      %58 = arith.mulf %57, %56 : vector<2x16x1xf32>
      %59 = vector.shape_cast %55 : vector<2x16xf32> to vector<2x1x16xf32>
      %60 = vector.broadcast %52 : f32 to vector<2x1x16xf32>
      %61 = arith.mulf %60, %59 : vector<2x1x16xf32>
      %62 = vector.broadcast %58 : vector<2x16x1xf32> to vector<2x16x16xf32>
      %63 = vector.broadcast %61 : vector<2x1x16xf32> to vector<2x16x16xf32>
      %64 = arith.addf %62, %63 : vector<2x16x16xf32>
      %cst_35 = arith.constant 0.000000e+00 : f32
      %65 = vector.broadcast %cst_35 : f32 to vector<2x16x16xf32>
      %66 = arith.cmpf ogt, %64, %65 : vector<2x16x16xf32>
      %cst_36 = arith.constant 2.000000e-01 : f32
      %67 = vector.broadcast %cst_36 : f32 to vector<2x16x16xf32>
      %68 = arith.mulf %67, %64 : vector<2x16x16xf32>
      %69 = arith.select %66, %64, %68 : vector<2x16x16xi1>, vector<2x16x16xf32>
      %c0_37 = arith.constant 0 : index
      %c0_38 = arith.constant 0 : index
      %70 = vector.load %arg5[%c0_37, %c0_38] : memref<16x16xf32, #tpu.memory_space<vmem>>, vector<16x16xf32>
      %71 = vector.shape_cast %70 : vector<16x16xf32> to vector<1x16x16xf32>
      %72 = vector.broadcast %71 : vector<1x16x16xf32> to vector<2x16x16xf32>
      %73 = arith.mulf %69, %72 : vector<2x16x16xf32>
      %cst_39 = arith.constant dense<0xFF800000> : vector<2x16xf32>
      %74 = vector.multi_reduction <maximumf>, %73, %cst_39 [2] : vector<2x16x16xf32> to vector<2x16xf32>
      %75 = vector.shape_cast %74 : vector<2x16xf32> to vector<2x16x1xf32>
      %76 = vector.broadcast %75 : vector<2x16x1xf32> to vector<2x16x16xf32>
      %77 = arith.subf %73, %76 : vector<2x16x16xf32>
      %78 = math.exp %77 : vector<2x16x16xf32>
      %cst_40 = arith.constant dense<0.000000e+00> : vector<2x16xf32>
      %79 = vector.multi_reduction <add>, %78, %cst_40 [2] : vector<2x16x16xf32> to vector<2x16xf32>
      %80 = vector.shape_cast %79 : vector<2x16xf32> to vector<2x16x1xf32>
      %81 = tpu.reciprocal %80 : vector<2x16x1xf32> -> vector<2x16x1xf32>
      %82 = vector.broadcast %81 : vector<2x16x1xf32> to vector<2x16x16xf32>
      %83 = arith.mulf %78, %82 : vector<2x16x16xf32>
      %84 = vector.shape_cast %55 : vector<2x16xf32> to vector<2x1x16xf32>
      %85 = vector.broadcast %84 : vector<2x1x16xf32> to vector<2x16x16xf32>
      %86 = arith.mulf %83, %85 : vector<2x16x16xf32>
      %cst_41 = arith.constant dense<0.000000e+00> : vector<2x16xf32>
      %87 = vector.multi_reduction <add>, %86, %cst_41 [2] : vector<2x16x16xf32> to vector<2x16xf32>
      %88 = vector.broadcast %53 : f32 to vector<2x16xf32>
      %89 = arith.mulf %88, %55 : vector<2x16xf32>
      %90 = arith.addf %87, %89 : vector<2x16xf32>
      %cst_42 = arith.constant 0.000000e+00 : f32
      %91 = vector.broadcast %cst_42 : f32 to vector<2x16xf32>
      %92 = arith.cmpf ogt, %90, %91 : vector<2x16xf32>
      %cst_43 = arith.constant 0.000000e+00 : f32
      %93 = vector.broadcast %cst_43 : f32 to vector<2x16xf32>
      %94 = arith.minimumf %90, %93 : vector<2x16xf32>
      %95 = math.exp %94 : vector<2x16xf32>
      %cst_44 = arith.constant 1.000000e+00 : f32
      %96 = vector.broadcast %cst_44 : f32 to vector<2x16xf32>
      %97 = arith.subf %95, %96 : vector<2x16xf32>
      %98 = arith.select %92, %90, %97 : vector<2x16xi1>, vector<2x16xf32>
      %99 = arith.addf %49, %98 : vector<2x16xf32>
      %c0_45 = arith.constant 0 : index
      %c0_46 = arith.constant 0 : index
      %100 = vector.load %arg7[%c0_45, %c0_46] : memref<2x16xf32, #tpu.memory_space<vmem>>, vector<2x16xf32>
      tpu.vector_store %arg7[%c0_45, %c0_46], %99 {strides = array<i32>} : memref<2x16xf32, #tpu.memory_space<vmem>>, vector<2x16xf32>,
    } else {
    }
    return
  }
  func.func @transform_0(%arg0: i32, %arg1: i32) -> (i32, i32, i32) {
    %c0_i32 = arith.constant 0 : i32
    %c0_i32_0 = arith.constant 0 : i32
    return %arg0, %arg1, %c0_i32 : i32, i32, i32
  }
  func.func @transform_1(%arg0: i32, %arg1: i32) -> (i32, i32) {
    %c0_i32 = arith.constant 0 : i32
    %c0_i32_0 = arith.constant 0 : i32
    return %arg1, %c0_i32 : i32, i32
  }
  func.func @transform_2(%arg0: i32, %arg1: i32) -> (i32, i32) {
    %c0_i32 = arith.constant 0 : i32
    %c0_i32_0 = arith.constant 0 : i32
    %c0_i32_1 = arith.constant 0 : i32
    return %c0_i32, %c0_i32_0 : i32, i32
  }
  func.func @transform_3(%arg0: i32, %arg1: i32) -> (i32, i32) {
    %c0_i32 = arith.constant 0 : i32
    %c0_i32_0 = arith.constant 0 : i32
    %c0_i32_1 = arith.constant 0 : i32
    return %c0_i32, %c0_i32_0 : i32, i32
  }
  func.func @transform_4(%arg0: i32, %arg1: i32) -> i32 {
    %c0_i32 = arith.constant 0 : i32
    %c0_i32_0 = arith.constant 0 : i32
    return %c0_i32 : i32
  }
  func.func @transform_5(%arg0: i32, %arg1: i32) -> (i32, i32) {
    %c0_i32 = arith.constant 0 : i32
    %c0_i32_0 = arith.constant 0 : i32
    return %arg0, %c0_i32 : i32, i32
  }
}

</mosaic_0001>

<llo_original>
// kernel: head_forward.1
$region0: #{head_forward.1}
  #allocation0 [shape = 'u32[]', space=smem, size = 0x4, offset = 0x4, fixed_abs, tag = 'smem constant byte address 0x4 - core index']
  #allocation1 [shape = 'u32[144,128]{1,0:T(1,128)}', space=vmem, size = 0x12000, scoped, tag = 'internal scratch']
  #allocation2 [shape = 'f32[2,16]{1,0:T(2,128)}', space=vmem, size = 0x400, scoped, tag = 'scratch operand']
  %s0 = inlined_call_operand.vmem [shape: f32[2,2048,16], index: 0, kind: input, shape index: {}]
  %s1 = inlined_call_operand.vmem [shape: f32[2048,16], index: 1, kind: input, shape index: {}]
  %s2 = inlined_call_operand.vmem [shape: f32[1,16], index: 2, kind: input, shape index: {}]
  %s3 = inlined_call_operand.vmem [shape: f32[16,16], index: 3, kind: input, shape index: {}]
  %s4 = inlined_call_operand.vmem [shape: f32[4], index: 4, kind: input, shape index: {}]
  %s5 = inlined_call_operand.hbm [shape: f32[2,16], index: 5, kind: output, shape index: {}]
  %s6 = sld [smem:[#allocation0]]
  $region103: #{head_forward.1} parent=0
    _
  %s8 = ssub.s32 1, %s6
  %s9 = scalar_select 0, %s8, %s6
  $region1: #{head_forward.1} parent=0
    #allocation3 [shape = 'u8[1048576]{0}', space=vmem, size = 0x100000, scoped, tag = 'input window, operand 0']
    #allocation4 [shape = 'u8[512]{0}', space=smem, size = 0x200, scoped, tag = 'input window, operand 4, single buffered']
    #allocation5 [shape = 's32[2]{0}', space=sflag, size = 0x8, scoped, tag = 'scoped memory for head_forward.1']
    #allocation6 [shape = 's32[2]{0}', space=sflag, size = 0x8, scoped, tag = 'scoped memory for head_forward.1']
    #allocation7 [shape = 'u8[1024]{0}', space=vmem, size = 0x400, scoped, tag = 'output window, operand 0, single buffered']
    %10 = vsyncpa [#allocation6], 0
    %11 = vsyncpa [#allocation5], 0
    loop: start=0, step=1, limit=6
    $region2: #{head_forward.1} parent=1 // loop_pre_header
      _
    $region3: #{head_forward.1} parent=1 // loop_header
      %s13 = sphi 0, %s17
      %p14 = scmp.ge.s32.totalorder %s13, 6
      %s20 = sphi 0, %s32
      %s21 = sphi 0, %s28
      %s22 = sphi 0, %s20
      %s23 = sphi 0, %s21
      %s24 = sphi 0, %s22
      %s25 = sphi 0, %s23
      %s37 = sphi 0, %s39
      %s40 = sphi 0, %s37
      %s41 = sphi 0, %s40
      %s57 = sphi 0, %s41
      %s63 = sphi 0, %s65
      %s66 = sphi 0, %s63
      %s67 = sphi 0, %s66
      %s83 = sphi 0, %s67
      %s87 = sphi 0, %s87
      %s89 = sphi 0, %s87
      %s90 = sphi 0, %s89
      %s104 = sphi 0, %s90
      %s108 = sphi 0, %s108
      %s110 = sphi 0, %s108
      %s111 = sphi 0, %s110
      %s125 = sphi 0, %s111
      %s129 = sphi 0, %s129
      %s131 = sphi 0, %s129
      %s132 = sphi 0, %s131
      %s146 = sphi 0, %s132
      %s152 = sphi 0, %s154
      %s155 = sphi 0, %s152
      %s156 = sphi 0, %s155
      %s172 = sphi 0, %s156
    $region4: #{head_forward.1} parent=1 // loop_header_branch
      %16 = sbr.rel (%p14) target = $region8
    $region5: #{head_forward.1} parent=1 // loop_body
      %s18 = ssub.s32 %s13, 1
      %s19 = ssub.s32 %s13, 2
      %s26 = sadd.s32 1, %s21
      %p27 = scmp.ge.s32.totalorder %s26, 4
      %s28 = scalar_select %p27, 0, %s26
      %s29 = sadd.s32 1, %s20
      %s30 = scalar_select %p27, %s29, %s20
      %p31 = scmp.ge.s32.totalorder %s30, 1
      %s32 = scalar_select %p31, 0, %s30
      %s33 = ssub.s32 %s20, %s32
      %s34 = ssub.s32 %s21, %s28
      %s35 = sor.u32 %s33, %s34
      %p36 = scmp.eq.s32.totalorder %s35, 0
      %s38 = sadd.s32 %s37, 1
      %s39 = scalar_select %p36, %s37, %s38
      %p42 = pneg %p36
      %p43 = scmp.eq.s32.totalorder %s13, 3
      %p44 = por %p42, %p43
      %p45 = scmp.ne.s32.totalorder %s37, %s40
      %p46 = scmp.eq.s32.totalorder %s13, 0
      %p47 = por %p45, %p46
      %p48 = scmp.ne.s32.totalorder %s37, %s40
      %p49 = scmp.eq.s32.totalorder %s18, 3
      %p50 = por %p48, %p49
      %p51 = scmp.ne.s32.totalorder %s40, %s41
      %p52 = scmp.eq.s32.totalorder %s18, 0
      %p53 = por %p51, %p52
      %p54 = scmp.ne.s32.totalorder %s40, %s41
      %p55 = scmp.eq.s32.totalorder %s19, 3
      %p56 = por %p54, %p55
      %p58 = scmp.ne.s32.totalorder %s41, %s57
      %p59 = scmp.eq.s32.totalorder %s19, 0
      %p60 = por %p58, %p59
      %s61 = ssub.s32 %s21, %s28
      %p62 = scmp.eq.s32.totalorder %s61, 0
      %s64 = sadd.s32 %s63, 1
      %s65 = scalar_select %p62, %s63, %s64
      %p68 = pneg %p62
      %p69 = scmp.eq.s32.totalorder %s13, 3
      %p70 = por %p68, %p69
      %p71 = scmp.ne.s32.totalorder %s63, %s66
      %p72 = scmp.eq.s32.totalorder %s13, 0
      %p73 = por %p71, %p72
      %p74 = scmp.ne.s32.totalorder %s63, %s66
      %p75 = scmp.eq.s32.totalorder %s18, 3
      %p76 = por %p74, %p75
      %p77 = scmp.ne.s32.totalorder %s66, %s67
      %p78 = scmp.eq.s32.totalorder %s18, 0
      %p79 = por %p77, %p78
      %p80 = scmp.ne.s32.totalorder %s66, %s67
      %p81 = scmp.eq.s32.totalorder %s19, 3
      %p82 = por %p80, %p81
      %p84 = scmp.ne.s32.totalorder %s67, %s83
      %p85 = scmp.eq.s32.totalorder %s19, 0
      %p86 = por %p84, %p85
      %s88 = sadd.s32 %s87, 1
      %p91 = scmp.eq.s32.totalorder %s13, 3
      %p92 = scmp.ne.s32.totalorder %s87, %s89
      %p93 = scmp.eq.s32.totalorder %s13, 0
      %p94 = por %p92, %p93
      %p95 = scmp.ne.s32.totalorder %s87, %s89
      %p96 = scmp.eq.s32.totalorder %s18, 3
      %p97 = por %p95, %p96
      %p98 = scmp.ne.s32.totalorder %s89, %s90
      %p99 = scmp.eq.s32.totalorder %s18, 0
      %p100 = por %p98, %p99
      %p101 = scmp.ne.s32.totalorder %s89, %s90
      %p102 = scmp.eq.s32.totalorder %s19, 3
      %p103 = por %p101, %p102
      %p105 = scmp.ne.s32.totalorder %s90, %s104
      %p106 = scmp.eq.s32.totalorder %s19, 0
      %p107 = por %p105, %p106
      %s109 = sadd.s32 %s108, 1
      %p112 = scmp.eq.s32.totalorder %s13, 3
      %p113 = scmp.ne.s32.totalorder %s108, %s110
      %p114 = scmp.eq.s32.totalorder %s13, 0
      %p115 = por %p113, %p114
      %p116 = scmp.ne.s32.totalorder %s108, %s110
      %p117 = scmp.eq.s32.totalorder %s18, 3
      %p118 = por %p116, %p117
      %p119 = scmp.ne.s32.totalorder %s110, %s111
      %p120 = scmp.eq.s32.totalorder %s18, 0
      %p121 = por %p119, %p120
      %p122 = scmp.ne.s32.totalorder %s110, %s111
      %p123 = scmp.eq.s32.totalorder %s19, 3
      %p124 = por %p122, %p123
      %p126 = scmp.ne.s32.totalorder %s111, %s125
      %p127 = scmp.eq.s32.totalorder %s19, 0
      %p128 = por %p126, %p127
      %s130 = sadd.s32 %s129, 1
      %p133 = scmp.eq.s32.totalorder %s13, 3
      %p134 = scmp.ne.s32.totalorder %s129, %s131
      %p135 = scmp.eq.s32.totalorder %s13, 0
      %p136 = por %p134, %p135
      %p137 = scmp.ne.s32.totalorder %s129, %s131
      %p138 = scmp.eq.s32.totalorder %s18, 3
      %p139 = por %p137, %p138
      %p140 = scmp.ne.s32.totalorder %s131, %s132
      %p141 = scmp.eq.s32.totalorder %s18, 0
      %p142 = por %p140, %p141
      %p143 = scmp.ne.s32.totalorder %s131, %s132
      %p144 = scmp.eq.s32.totalorder %s19, 3
      %p145 = por %p143, %p144
      %p147 = scmp.ne.s32.totalorder %s132, %s146
      %p148 = scmp.eq.s32.totalorder %s19, 0
      %p149 = por %p147, %p148
      %s150 = ssub.s32 %s20, %s32
      %p151 = scmp.eq.s32.totalorder %s150, 0
      %s153 = sadd.s32 %s152, 1
      %s154 = scalar_select %p151, %s152, %s153
      %p157 = pneg %p151
      %p158 = scmp.eq.s32.totalorder %s13, 3
      %p159 = por %p157, %p158
      %p160 = scmp.ne.s32.totalorder %s152, %s155
      %p161 = scmp.eq.s32.totalorder %s13, 0
      %p162 = por %p160, %p161
      %p163 = scmp.ne.s32.totalorder %s152, %s155
      %p164 = scmp.eq.s32.totalorder %s18, 3
      %p165 = por %p163, %p164
      %p166 = scmp.ne.s32.totalorder %s155, %s156
      %p167 = scmp.eq.s32.totalorder %s18, 0
      %p168 = por %p166, %p167
      %p169 = scmp.ne.s32.totalorder %s155, %s156
      %p170 = scmp.eq.s32.totalorder %s19, 3
      %p171 = por %p169, %p170
      %p173 = scmp.ne.s32.totalorder %s156, %s172
      %p174 = scmp.eq.s32.totalorder %s19, 0
      %p175 = por %p173, %p174
      %p176 = scmp.le.s32.totalorder 1, %s13
      %p177 = scmp.lt.s32.totalorder %s13, 5
      %p178 = pnand %p176, %p177
      %p179 = pneg %p178
      // Predicated region
      $region9: #{head_forward.1} parent=5 // pred_check
        _
      $region10: #{head_forward.1} parent=5 // pred_check_branch
        %181 = sbr.rel (%p178) target = $region12
      $region11: #{head_forward.1} parent=5 // pred_region
        %s182 = ssub.s32 %s13, 1
        // Predicated region
        $region13: #{head_forward.1} parent=11 // pred_check
          %p183 = pneg %p100
        $region14: #{head_forward.1} parent=11 // pred_check_branch
          %185 = sbr.rel (%p183) target = $region16
        $region15: #{head_forward.1} parent=11 // pred_region
          _
        $region16: #{head_forward.1} parent=11 // pred_fallthru
          _
        // Predicated region
        $region17: #{head_forward.1} parent=11 // pred_check
          %p186 = pneg %p121
        $region18: #{head_forward.1} parent=11 // pred_check_branch
          %188 = sbr.rel (%p186) target = $region20
        $region19: #{head_forward.1} parent=11 // pred_region
          _
        $region20: #{head_forward.1} parent=11 // pred_fallthru
          _
        // Predicated region
        $region21: #{head_forward.1} parent=11 // pred_check
          %p189 = pneg %p142
        $region22: #{head_forward.1} parent=11 // pred_check_branch
          %191 = sbr.rel (%p189) target = $region24
        $region23: #{head_forward.1} parent=11 // pred_region
          %s193 = ssub.s32 16, 16
          %194 = vsyncadd [#allocation6], %s193
          %s196 = sshll.u32 %s4, 4
          %s197 = int_to_ptr.vmem [resolvable:$true] %s196
          %199 = dma.vmem_to_smem %s197, 16, [#allocation4], [#allocation6]
        $region24: #{head_forward.1} parent=11 // pred_fallthru
          _
      $region12: #{head_forward.1} parent=5 // pred_fallthru
        _
      %p200 = scmp.lt.s32.totalorder %s13, 4
      // Predicated region
      $region25: #{head_forward.1} parent=5 // pred_check
        %p201 = pneg %p200
      $region26: #{head_forward.1} parent=5 // pred_check_branch
        %203 = sbr.rel (%p201) target = $region28
      $region27: #{head_forward.1} parent=5 // pred_region
        // Predicated region
        $region29: #{head_forward.1} parent=27 // pred_check
          %p204 = pneg %p47
        $region30: #{head_forward.1} parent=27 // pred_check_branch
          %206 = sbr.rel (%p204) target = $region32
        $region31: #{head_forward.1} parent=27 // pred_region
          %s207 = sand.u32 %s37, 1
          %s208 = sand.u32 %s37, 1
          %s209 = smul.addr %s208, 1024
          %s210 = scalar_lea.vmem [#allocation3], %s209
          %s211 = smul.u32 2, %s20
          %s212 = smul.u32 64, %s21
          %s213 = smul.addr %s211, 256
          %s214 = sadd.s32 %s212, %s213
          %s215 = smul.addr %s214, 8
          %s216 = scalar_lea.vmem %s0, %s215
          // Predicated region
          $region33: #{head_forward.1} parent=31 // pred_check
            _
          $region34: #{head_forward.1} parent=31 // pred_check_branch
            %218 = sbr.rel (0) target = $region36
          $region35: #{head_forward.1} parent=31 // pred_region
            // Predicated region
            $region37: #{head_forward.1} parent=35 // pred_check
              _
            $region38: #{head_forward.1} parent=35 // pred_check_branch
              %220 = sbr.rel (0) target = $region40
            $region39: #{head_forward.1} parent=35 // pred_region
              // Predicated region
              $region52: #{head_forward.1} parent=39 // pred_check
                _
              $region53: #{head_forward.1} parent=39 // pred_check_branch
                %489 = sbr.rel (0) target = $region55
              $region54: #{head_forward.1} parent=39 // pred_region
                loop: start=0, step=1, limit=1
                $region56: #{head_forward.1} parent=54 // loop_pre_header
                  _
                $region57: #{head_forward.1} parent=54 // loop_header
                  %s491 = sphi 0, %s495
                  %p492 = scmp.ge.s32.totalorder %s491, 1
                  %s496 = sphi %s216, %s216
                  %s497 = sphi %s210, %s210
                $region58: #{head_forward.1} parent=54 // loop_header_branch
                  %494 = sbr.rel (%p492) target = $region62
                $region59: #{head_forward.1} parent=54 // loop_body
                  %v498 = vld [vmem:[%s496] sm:$0xff]
                  %499 = vst [vmem:[%s497] sm:$0xff] %v498
                  %v500 = vld [vmem:[%s496 + $0x8] sm:$0xff]
                  %501 = vst [vmem:[%s497 + $0x8] sm:$0xff] %v500
                  %v502 = vld [vmem:[%s496 + $0x10] sm:$0xff]
                  %503 = vst [vmem:[%s497 + $0x10] sm:$0xff] %v502
                  %v504 = vld [vmem:[%s496 + $0x18] sm:$0xff]
                  %505 = vst [vmem:[%s497 + $0x18] sm:$0xff] %v504
                  %v506 = vld [vmem:[%s496 + $0x20] sm:$0xff]
                  %507 = vst [vmem:[%s497 + $0x20] sm:$0xff] %v506
                  %v508 = vld [vmem:[%s496 + $0x28] sm:$0xff]
                  %509 = vst [vmem:[%s497 + $0x28] sm:$0xff] %v508
                  %v510 = vld [vmem:[%s496 + $0x30] sm:$0xff]
                  %511 = vst [vmem:[%s497 + $0x30] sm:$0xff] %v510
                  %v512 = vld [vmem:[%s496 + $0x38] sm:$0xff]
                  %513 = vst [vmem:[%s497 + $0x38] sm:$0xff] %v512
                  %v514 = vld [vmem:[%s496 + $0x40] sm:$0xff]
                  %515 = vst [vmem:[%s497 + $0x40] sm:$0xff] %v514
                  %v516 = vld [vmem:[%s496 + $0x48] sm:$0xff]
                  %517 = vst [vmem:[%s497 + $0x48] sm:$0xff] %v516
                  %v518 = vld [vmem:[%s496 + $0x50] sm:$0xff]
                  %519 = vst [vmem:[%s497 + $0x50] sm:$0xff] %v518
                  %v520 = vld [vmem:[%s496 + $0x58] sm:$0xff]
                  %521 = vst [vmem:[%s497 + $0x58] sm:$0xff] %v520
                  %v522 = vld [vmem:[%s496 + $0x60] sm:$0xff]
                  %523 = vst [vmem:[%s497 + $0x60] sm:$0xff] %v522
                  %v524 = vld [vmem:[%s496 + $0x68] sm:$0xff]
                  %525 = vst [vmem:[%s497 + $0x68] sm:$0xff] %v524
                  %v526 = vld [vmem:[%s496 + $0x70] sm:$0xff]
                  %527 = vst [vmem:[%s497 + $0x70] sm:$0xff] %v526
                  %v528 = vld [vmem:[%s496 + $0x78] sm:$0xff]
                  %529 = vst [vmem:[%s497 + $0x78] sm:$0xff] %v528
                  %v530 = vld [vmem:[%s496 + $0x80] sm:$0xff]
                  %531 = vst [vmem:[%s497 + $0x80] sm:$0xff] %v530
                  %v532 = vld [vmem:[%s496 + $0x88] sm:$0xff]
                  %533 = vst [vmem:[%s497 + $0x88] sm:$0xff] %v532
                  %v534 = vld [vmem:[%s496 + $0x90] sm:$0xff]
                  %535 = vst [vmem:[%s497 + $0x90] sm:$0xff] %v534
                  %v536 = vld [vmem:[%s496 + $0x98] sm:$0xff]
                  %537 = vst [vmem:[%s497 + $0x98] sm:$0xff] %v536
                  %v538 = vld [vmem:[%s496 + $0xa0] sm:$0xff]
                  %539 = vst [vmem:[%s497 + $0xa0] sm:$0xff] %v538
                  %v540 = vld [vmem:[%s496 + $0xa8] sm:$0xff]
                  %541 = vst [vmem:[%s497 + $0xa8] sm:$0xff] %v540
                  %v542 = vld [vmem:[%s496 + $0xb0] sm:$0xff]
                  %543 = vst [vmem:[%s497 + $0xb0] sm:$0xff] %v542
                  %v544 = vld [vmem:[%s496 + $0xb8] sm:$0xff]
                  %545 = vst [vmem:[%s497 + $0xb8] sm:$0xff] %v544
                  %v546 = vld [vmem:[%s496 + $0xc0] sm:$0xff]
                  %547 = vst [vmem:[%s497 + $0xc0] sm:$0xff] %v546
                  %v548 = vld [vmem:[%s496 + $0xc8] sm:$0xff]
                  %549 = vst [vmem:[%s497 + $0xc8] sm:$0xff] %v548
                  %v550 = vld [vmem:[%s496 + $0xd0] sm:$0xff]
                  %551 = vst [vmem:[%s497 + $0xd0] sm:$0xff] %v550
                  %v552 = vld [vmem:[%s496 + $0xd8] sm:$0xff]
                  %553 = vst [vmem:[%s497 + $0xd8] sm:$0xff] %v552
                  %v554 = vld [vmem:[%s496 + $0xe0] sm:$0xff]
                  %555 = vst [vmem:[%s497 + $0xe0] sm:$0xff] %v554
                  %v556 = vld [vmem:[%s496 + $0xe8] sm:$0xff]
                  %557 = vst [vmem:[%s497 + $0xe8] sm:$0xff] %v556
                  %v558 = vld [vmem:[%s496 + $0xf0] sm:$0xff]
                  %559 = vst [vmem:[%s497 + $0xf0] sm:$0xff] %v558
                  %v560 = vld [vmem:[%s496 + $0xf8] sm:$0xff]
                  %561 = vst [vmem:[%s497 + $0xf8] sm:$0xff] %v560
                  %v562 = vld [vmem:[%s496 + $0x100] sm:$0xff]
                  %563 = vst [vmem:[%s497 + $0x100] sm:$0xff] %v562
                  %v564 = vld [vmem:[%s496 + $0x108] sm:$0xff]
                  %565 = vst [vmem:[%s497 + $0x108] sm:$0xff] %v564
                  %v566 = vld [vmem:[%s496 + $0x110] sm:$0xff]
                  %567 = vst [vmem:[%s497 + $0x110] sm:$0xff] %v566
                  %v568 = vld [vmem:[%s496 + $0x118] sm:$0xff]
                  %569 = vst [vmem:[%s497 + $0x118] sm:$0xff] %v568
                  %v570 = vld [vmem:[%s496 + $0x120] sm:$0xff]
                  %571 = vst [vmem:[%s497 + $0x120] sm:$0xff] %v570
                  %v572 = vld [vmem:[%s496 + $0x128] sm:$0xff]
                  %573 = vst [vmem:[%s497 + $0x128] sm:$0xff] %v572
                  %v574 = vld [vmem:[%s496 + $0x130] sm:$0xff]
                  %575 = vst [vmem:[%s497 + $0x130] sm:$0xff] %v574
                  %v576 = vld [vmem:[%s496 + $0x138] sm:$0xff]
                  %577 = vst [vmem:[%s497 + $0x138] sm:$0xff] %v576
                  %v578 = vld [vmem:[%s496 + $0x140] sm:$0xff]
                  %579 = vst [vmem:[%s497 + $0x140] sm:$0xff] %v578
                  %v580 = vld [vmem:[%s496 + $0x148] sm:$0xff]
                  %581 = vst [vmem:[%s497 + $0x148] sm:$0xff] %v580
                  %v582 = vld [vmem:[%s496 + $0x150] sm:$0xff]
                  %583 = vst [vmem:[%s497 + $0x150] sm:$0xff] %v582
                  %v584 = vld [vmem:[%s496 + $0x158] sm:$0xff]
                  %585 = vst [vmem:[%s497 + $0x158] sm:$0xff] %v584
                  %v586 = vld [vmem:[%s496 + $0x160] sm:$0xff]
                  %587 = vst [vmem:[%s497 + $0x160] sm:$0xff] %v586
                  %v588 = vld [vmem:[%s496 + $0x168] sm:$0xff]
                  %589 = vst [vmem:[%s497 + $0x168] sm:$0xff] %v588
                  %v590 = vld [vmem:[%s496 + $0x170] sm:$0xff]
                  %591 = vst [vmem:[%s497 + $0x170] sm:$0xff] %v590
                  %v592 = vld [vmem:[%s496 + $0x178] sm:$0xff]
                  %593 = vst [vmem:[%s497 + $0x178] sm:$0xff] %v592
                  %v594 = vld [vmem:[%s496 + $0x180] sm:$0xff]
                  %595 = vst [vmem:[%s497 + $0x180] sm:$0xff] %v594
                  %v596 = vld [vmem:[%s496 + $0x188] sm:$0xff]
                  %597 = vst [vmem:[%s497 + $0x188] sm:$0xff] %v596
                  %v598 = vld [vmem:[%s496 + $0x190] sm:$0xff]
                  %599 = vst [vmem:[%s497 + $0x190] sm:$0xff] %v598
                  %v600 = vld [vmem:[%s496 + $0x198] sm:$0xff]
                  %601 = vst [vmem:[%s497 + $0x198] sm:$0xff] %v600
                  %v602 = vld [vmem:[%s496 + $0x1a0] sm:$0xff]
                  %603 = vst [vmem:[%s497 + $0x1a0] sm:$0xff] %v602
                  %v604 = vld [vmem:[%s496 + $0x1a8] sm:$0xff]
                  %605 = vst [vmem:[%s497 + $0x1a8] sm:$0xff] %v604
                  %v606 = vld [vmem:[%s496 + $0x1b0] sm:$0xff]
                  %607 = vst [vmem:[%s497 + $0x1b0] sm:$0xff] %v606
                  %v608 = vld [vmem:[%s496 + $0x1b8] sm:$0xff]
                  %609 = vst [vmem:[%s497 + $0x1b8] sm:$0xff] %v608
                  %v610 = vld [vmem:[%s496 + $0x1c0] sm:$0xff]
                  %611 = vst [vmem:[%s497 + $0x1c0] sm:$0xff] %v610
                  %v612 = vld [vmem:[%s496 + $0x1c8] sm:$0xff]
                  %613 = vst [vmem:[%s497 + $0x1c8] sm:$0xff] %v612
                  %v614 = vld [vmem:[%s496 + $0x1d0] sm:$0xff]
                  %615 = vst [vmem:[%s497 + $0x1d0] sm:$0xff] %v614
                  %v616 = vld [vmem:[%s496 + $0x1d8] sm:$0xff]
                  %617 = vst [vmem:[%s497 + $0x1d8] sm:$0xff] %v616
                  %v618 = vld [vmem:[%s496 + $0x1e0] sm:$0xff]
                  %619 = vst [vmem:[%s497 + $0x1e0] sm:$0xff] %v618
                  %v620 = vld [vmem:[%s496 + $0x1e8] sm:$0xff]
                  %621 = vst [vmem:[%s497 + $0x1e8] sm:$0xff] %v620
                  %v622 = vld [vmem:[%s496 + $0x1f0] sm:$0xff]
                  %623 = vst [vmem:[%s497 + $0x1f0] sm:$0xff] %v622
                  %v624 = vld [vmem:[%s496 + $0x1f8] sm:$0xff]
                  %625 = vst [vmem:[%s497 + $0x1f8] sm:$0xff] %v624
                  %v626 = vld [vmem:[%s496 + $0x800] sm:$0xff]
                  %627 = vst [vmem:[%s497 + $0x200] sm:$0xff] %v626
                  %v628 = vld [vmem:[%s496 + $0x808] sm:$0xff]
                  %629 = vst [vmem:[%s497 + $0x208] sm:$0xff] %v628
                  %v630 = vld [vmem:[%s496 + $0x810] sm:$0xff]
                  %631 = vst [vmem:[%s497 + $0x210] sm:$0xff] %v630
                  %v632 = vld [vmem:[%s496 + $0x818] sm:$0xff]
                  %633 = vst [vmem:[%s497 + $0x218] sm:$0xff] %v632
                  %v634 = vld [vmem:[%s496 + $0x820] sm:$0xff]
                  %635 = vst [vmem:[%s497 + $0x220] sm:$0xff] %v634
                  %v636 = vld [vmem:[%s496 + $0x828] sm:$0xff]
                  %637 = vst [vmem:[%s497 + $0x228] sm:$0xff] %v636
                  %v638 = vld [vmem:[%s496 + $0x830] sm:$0xff]
                  %639 = vst [vmem:[%s497 + $0x230] sm:$0xff] %v638
                  %v640 = vld [vmem:[%s496 + $0x838] sm:$0xff]
                  %641 = vst [vmem:[%s497 + $0x238] sm:$0xff] %v640
                  %v642 = vld [vmem:[%s496 + $0x840] sm:$0xff]
                  %643 = vst [vmem:[%s497 + $0x240] sm:$0xff] %v642
                  %v644 = vld [vmem:[%s496 + $0x848] sm:$0xff]
                  %645 = vst [vmem:[%s497 + $0x248] sm:$0xff] %v644
                  %v646 = vld [vmem:[%s496 + $0x850] sm:$0xff]
                  %647 = vst [vmem:[%s497 + $0x250] sm:$0xff] %v646
                  %v648 = vld [vmem:[%s496 + $0x858] sm:$0xff]
                  %649 = vst [vmem:[%s497 + $0x258] sm:$0xff] %v648
                  %v650 = vld [vmem:[%s496 + $0x860] sm:$0xff]
                  %651 = vst [vmem:[%s497 + $0x260] sm:$0xff] %v650
                  %v652 = vld [vmem:[%s496 + $0x868] sm:$0xff]
                  %653 = vst [vmem:[%s497 + $0x268] sm:$0xff] %v652
                  %v654 = vld [vmem:[%s496 + $0x870] sm:$0xff]
                  %655 = vst [vmem:[%s497 + $0x270] sm:$0xff] %v654
                  %v656 = vld [vmem:[%s496 + $0x878] sm:$0xff]
                  %657 = vst [vmem:[%s497 + $0x278] sm:$0xff] %v656
                  %v658 = vld [vmem:[%s496 + $0x880] sm:$0xff]
                  %659 = vst [vmem:[%s497 + $0x280] sm:$0xff] %v658
                  %v660 = vld [vmem:[%s496 + $0x888] sm:$0xff]
                  %661 = vst [vmem:[%s497 + $0x288] sm:$0xff] %v660
                  %v662 = vld [vmem:[%s496 + $0x890] sm:$0xff]
                  %663 = vst [vmem:[%s497 + $0x290] sm:$0xff] %v662
                  %v664 = vld [vmem:[%s496 + $0x898] sm:$0xff]
                  %665 = vst [vmem:[%s497 + $0x298] sm:$0xff] %v664
                  %v666 = vld [vmem:[%s496 + $0x8a0] sm:$0xff]
                  %667 = vst [vmem:[%s497 + $0x2a0] sm:$0xff] %v666
                  %v668 = vld [vmem:[%s496 + $0x8a8] sm:$0xff]
                  %669 = vst [vmem:[%s497 + $0x2a8] sm:$0xff] %v668
                  %v670 = vld [vmem:[%s496 + $0x8b0] sm:$0xff]
                  %671 = vst [vmem:[%s497 + $0x2b0] sm:$0xff] %v670
                  %v672 = vld [vmem:[%s496 + $0x8b8] sm:$0xff]
                  %673 = vst [vmem:[%s497 + $0x2b8] sm:$0xff] %v672
                  %v674 = vld [vmem:[%s496 + $0x8c0] sm:$0xff]
                  %675 = vst [vmem:[%s497 + $0x2c0] sm:$0xff] %v674
                  %v676 = vld [vmem:[%s496 + $0x8c8] sm:$0xff]
                  %677 = vst [vmem:[%s497 + $0x2c8] sm:$0xff] %v676
                  %v678 = vld [vmem:[%s496 + $0x8d0] sm:$0xff]
                  %679 = vst [vmem:[%s497 + $0x2d0] sm:$0xff] %v678
                  %v680 = vld [vmem:[%s496 + $0x8d8] sm:$0xff]
                  %681 = vst [vmem:[%s497 + $0x2d8] sm:$0xff] %v680
                  %v682 = vld [vmem:[%s496 + $0x8e0] sm:$0xff]
                  %683 = vst [vmem:[%s497 + $0x2e0] sm:$0xff] %v682
                  %v684 = vld [vmem:[%s496 + $0x8e8] sm:$0xff]
                  %685 = vst [vmem:[%s497 + $0x2e8] sm:$0xff] %v684
                  %v686 = vld [vmem:[%s496 + $0x8f0] sm:$0xff]
                  %687 = vst [vmem:[%s497 + $0x2f0] sm:$0xff] %v686
                  %v688 = vld [vmem:[%s496 + $0x8f8] sm:$0xff]
                  %689 = vst [vmem:[%s497 + $0x2f8] sm:$0xff] %v688
                  %v690 = vld [vmem:[%s496 + $0x900] sm:$0xff]
                  %691 = vst [vmem:[%s497 + $0x300] sm:$0xff] %v690
                  %v692 = vld [vmem:[%s496 + $0x908] sm:$0xff]
                  %693 = vst [vmem:[%s497 + $0x308] sm:$0xff] %v692
                  %v694 = vld [vmem:[%s496 + $0x910] sm:$0xff]
                  %695 = vst [vmem:[%s497 + $0x310] sm:$0xff] %v694
                  %v696 = vld [vmem:[%s496 + $0x918] sm:$0xff]
                  %697 = vst [vmem:[%s497 + $0x318] sm:$0xff] %v696
                  %v698 = vld [vmem:[%s496 + $0x920] sm:$0xff]
                  %699 = vst [vmem:[%s497 + $0x320] sm:$0xff] %v698
                  %v700 = vld [vmem:[%s496 + $0x928] sm:$0xff]
                  %701 = vst [vmem:[%s497 + $0x328] sm:$0xff] %v700
                  %v702 = vld [vmem:[%s496 + $0x930] sm:$0xff]
                  %703 = vst [vmem:[%s497 + $0x330] sm:$0xff] %v702
                  %v704 = vld [vmem:[%s496 + $0x938] sm:$0xff]
                  %705 = vst [vmem:[%s497 + $0x338] sm:$0xff] %v704
                  %v706 = vld [vmem:[%s496 + $0x940] sm:$0xff]
                  %707 = vst [vmem:[%s497 + $0x340] sm:$0xff] %v706
                  %v708 = vld [vmem:[%s496 + $0x948] sm:$0xff]
                  %709 = vst [vmem:[%s497 + $0x348] sm:$0xff] %v708
                  %v710 = vld [vmem:[%s496 + $0x950] sm:$0xff]
                  %711 = vst [vmem:[%s497 + $0x350] sm:$0xff] %v710
                  %v712 = vld [vmem:[%s496 + $0x958] sm:$0xff]
                  %713 = vst [vmem:[%s497 + $0x358] sm:$0xff] %v712
                  %v714 = vld [vmem:[%s496 + $0x960] sm:$0xff]
                  %715 = vst [vmem:[%s497 + $0x360] sm:$0xff] %v714
                  %v716 = vld [vmem:[%s496 + $0x968] sm:$0xff]
                  %717 = vst [vmem:[%s497 + $0x368] sm:$0xff] %v716
                  %v718 = vld [vmem:[%s496 + $0x970] sm:$0xff]
                  %719 = vst [vmem:[%s497 + $0x370] sm:$0xff] %v718
                  %v720 = vld [vmem:[%s496 + $0x978] sm:$0xff]
                  %721 = vst [vmem:[%s497 + $0x378] sm:$0xff] %v720
                  %v722 = vld [vmem:[%s496 + $0x980] sm:$0xff]
                  %723 = vst [vmem:[%s497 + $0x380] sm:$0xff] %v722
                  %v724 = vld [vmem:[%s496 + $0x988] sm:$0xff]
                  %725 = vst [vmem:[%s497 + $0x388] sm:$0xff] %v724
                  %v726 = vld [vmem:[%s496 + $0x990] sm:$0xff]
                  %727 = vst [vmem:[%s497 + $0x390] sm:$0xff] %v726
                  %v728 = vld [vmem:[%s496 + $0x998] sm:$0xff]
                  %729 = vst [vmem:[%s497 + $0x398] sm:$0xff] %v728
                  %v730 = vld [vmem:[%s496 + $0x9a0] sm:$0xff]
                  %731 = vst [vmem:[%s497 + $0x3a0] sm:$0xff] %v730
                  %v732 = vld [vmem:[%s496 + $0x9a8] sm:$0xff]
                  %733 = vst [vmem:[%s497 + $0x3a8] sm:$0xff] %v732
                  %v734 = vld [vmem:[%s496 + $0x9b0] sm:$0xff]
                  %735 = vst [vmem:[%s497 + $0x3b0] sm:$0xff] %v734
                  %v736 = vld [vmem:[%s496 + $0x9b8] sm:$0xff]
                  %737 = vst [vmem:[%s497 + $0x3b8] sm:$0xff] %v736
                  %v738 = vld [vmem:[%s496 + $0x9c0] sm:$0xff]
                  %739 = vst [vmem:[%s497 + $0x3c0] sm:$0xff] %v738
                  %v740 = vld [vmem:[%s496 + $0x9c8] sm:$0xff]
                  %741 = vst [vmem:[%s497 + $0x3c8] sm:$0xff] %v740
                  %v742 = vld [vmem:[%s496 + $0x9d0] sm:$0xff]
                  %743 = vst [vmem:[%s497 + $0x3d0] sm:$0xff] %v742
                  %v744 = vld [vmem:[%s496 + $0x9d8] sm:$0xff]
                  %745 = vst [vmem:[%s497 + $0x3d8] sm:$0xff] %v744
                  %v746 = vld [vmem:[%s496 + $0x9e0] sm:$0xff]
                  %747 = vst [vmem:[%s497 + $0x3e0] sm:$0xff] %v746
                  %v748 = vld [vmem:[%s496 + $0x9e8] sm:$0xff]
                  %749 = vst [vmem:[%s497 + $0x3e8] sm:$0xff] %v748
                  %v750 = vld [vmem:[%s496 + $0x9f0] sm:$0xff]
                  %751 = vst [vmem:[%s497 + $0x3f0] sm:$0xff] %v750
                  %v752 = vld [vmem:[%s496 + $0x9f8] sm:$0xff]
                  %753 = vst [vmem:[%s497 + $0x3f8] sm:$0xff] %v752
                $region60: #{head_forward.1} parent=54 // loop_footer
                  %s495 = sadd.s32 1, %s491
                $region61: #{head_forward.1} parent=54 // loop_footer_branch
                  %490 = sbr.rel target = $region57
                $region62: #{head_forward.1} parent=54 // loop_exit
                  _
              $region55: #{head_forward.1} parent=39 // pred_fallthru
                _
              // Predicated region
              $region63: #{head_forward.1} parent=39 // pred_check
                _
              $region64: #{head_forward.1} parent=39 // pred_check_branch
                %755 = sbr.rel target = $region66
              $region65: #{head_forward.1} parent=39 // pred_region
                _
              $region66: #{head_forward.1} parent=39 // pred_fallthru
                _
            $region40: #{head_forward.1} parent=35 // pred_fallthru
              _
            // Predicated region
            $region41: #{head_forward.1} parent=35 // pred_check
              _
            $region42: #{head_forward.1} parent=35 // pred_check_branch
              %222 = sbr.rel target = $region44
            $region43: #{head_forward.1} parent=35 // pred_region
              loop: start=0, step=1, limit=1
              $region45: #{head_forward.1} parent=43 // loop_pre_header
                _
              $region46: #{head_forward.1} parent=43 // loop_header
                %s225 = sphi 0, %s229
                %p226 = scmp.ge.s32.totalorder %s225, 1
                %s230 = sphi %s216, %s216
                %s231 = sphi %s210, %s210
              $region47: #{head_forward.1} parent=43 // loop_header_branch
                %228 = sbr.rel (%p226) target = $region51
              $region48: #{head_forward.1} parent=43 // loop_body
                %v232 = vld [vmem:[%s230] sm:$0xff]
                %233 = vst [vmem:[%s231] sm:$0xff] %v232
                %v234 = vld [vmem:[%s230 + $0x8] sm:$0xff]
                %235 = vst [vmem:[%s231 + $0x8] sm:$0xff] %v234
                %v236 = vld [vmem:[%s230 + $0x10] sm:$0xff]
                %237 = vst [vmem:[%s231 + $0x10] sm:$0xff] %v236
                %v238 = vld [vmem:[%s230 + $0x18] sm:$0xff]
                %239 = vst [vmem:[%s231 + $0x18] sm:$0xff] %v238
                %v240 = vld [vmem:[%s230 + $0x20] sm:$0xff]
                %241 = vst [vmem:[%s231 + $0x20] sm:$0xff] %v240
                %v242 = vld [vmem:[%s230 + $0x28] sm:$0xff]
                %243 = vst [vmem:[%s231 + $0x28] sm:$0xff] %v242
                %v244 = vld [vmem:[%s230 + $0x30] sm:$0xff]
                %245 = vst [vmem:[%s231 + $0x30] sm:$0xff] %v244
                %v246 = vld [vmem:[%s230 + $0x38] sm:$0xff]
                %247 = vst [vmem:[%s231 + $0x38] sm:$0xff] %v246
                %v248 = vld [vmem:[%s230 + $0x40] sm:$0xff]
                %249 = vst [vmem:[%s231 + $0x40] sm:$0xff] %v248
                %v250 = vld [vmem:[%s230 + $0x48] sm:$0xff]
                %251 = vst [vmem:[%s231 + $0x48] sm:$0xff] %v250
                %v252 = vld [vmem:[%s230 + $0x50] sm:$0xff]
                %253 = vst [vmem:[%s231 + $0x50] sm:$0xff] %v252
                %v254 = vld [vmem:[%s230 + $0x58] sm:$0xff]
                %255 = vst [vmem:[%s231 + $0x58] sm:$0xff] %v254
                %v256 = vld [vmem:[%s230 + $0x60] sm:$0xff]
                %257 = vst [vmem:[%s231 + $0x60] sm:$0xff] %v256
                %v258 = vld [vmem:[%s230 + $0x68] sm:$0xff]
                %259 = vst [vmem:[%s231 + $0x68] sm:$0xff] %v258
                %v260 = vld [vmem:[%s230 + $0x70] sm:$0xff]
                %261 = vst [vmem:[%s231 + $0x70] sm:$0xff] %v260
                %v262 = vld [vmem:[%s230 + $0x78] sm:$0xff]
                %263 = vst [vmem:[%s231 + $0x78] sm:$0xff] %v262
                %v264 = vld [vmem:[%s230 + $0x80] sm:$0xff]
                %265 = vst [vmem:[%s231 + $0x80] sm:$0xff] %v264
                %v266 = vld [vmem:[%s230 + $0x88] sm:$0xff]
                %267 = vst [vmem:[%s231 + $0x88] sm:$0xff] %v266
                %v268 = vld [vmem:[%s230 + $0x90] sm:$0xff]
                %269 = vst [vmem:[%s231 + $0x90] sm:$0xff] %v268
                %v270 = vld [vmem:[%s230 + $0x98] sm:$0xff]
                %271 = vst [vmem:[%s231 + $0x98] sm:$0xff] %v270
                %v272 = vld [vmem:[%s230 + $0xa0] sm:$0xff]
                %273 = vst [vmem:[%s231 + $0xa0] sm:$0xff] %v272
                %v274 = vld [vmem:[%s230 + $0xa8] sm:$0xff]
                %275 = vst [vmem:[%s231 + $0xa8] sm:$0xff] %v274
                %v276 = vld [vmem:[%s230 + $0xb0] sm:$0xff]
                %277 = vst [vmem:[%s231 + $0xb0] sm:$0xff] %v276
                %v278 = vld [vmem:[%s230 + $0xb8] sm:$0xff]
                %279 = vst [vmem:[%s231 + $0xb8] sm:$0xff] %v278
                %v280 = vld [vmem:[%s230 + $0xc0] sm:$0xff]
                %281 = vst [vmem:[%s231 + $0xc0] sm:$0xff] %v280
                %v282 = vld [vmem:[%s230 + $0xc8] sm:$0xff]
                %283 = vst [vmem:[%s231 + $0xc8] sm:$0xff] %v282
                %v284 = vld [vmem:[%s230 + $0xd0] sm:$0xff]
                %285 = vst [vmem:[%s231 + $0xd0] sm:$0xff] %v284
                %v286 = vld [vmem:[%s230 + $0xd8] sm:$0xff]
                %287 = vst [vmem:[%s231 + $0xd8] sm:$0xff] %v286
                %v288 = vld [vmem:[%s230 + $0xe0] sm:$0xff]
                %289 = vst [vmem:[%s231 + $0xe0] sm:$0xff] %v288
                %v290 = vld [vmem:[%s230 + $0xe8] sm:$0xff]
                %291 = vst [vmem:[%s231 + $0xe8] sm:$0xff] %v290
                %v292 = vld [vmem:[%s230 + $0xf0] sm:$0xff]
                %293 = vst [vmem:[%s231 + $0xf0] sm:$0xff] %v292
                %v294 = vld [vmem:[%s230 + $0xf8] sm:$0xff]
                %295 = vst [vmem:[%s231 + $0xf8] sm:$0xff] %v294
                %v296 = vld [vmem:[%s230 + $0x100] sm:$0xff]
                %297 = vst [vmem:[%s231 + $0x100] sm:$0xff] %v296
                %v298 = vld [vmem:[%s230 + $0x108] sm:$0xff]
                %299 = vst [vmem:[%s231 + $0x108] sm:$0xff] %v298
                %v300 = vld [vmem:[%s230 + $0x110] sm:$0xff]
                %301 = vst [vmem:[%s231 + $0x110] sm:$0xff] %v300
                %v302 = vld [vmem:[%s230 + $0x118] sm:$0xff]
                %303 = vst [vmem:[%s231 + $0x118] sm:$0xff] %v302
                %v304 = vld [vmem:[%s230 + $0x120] sm:$0xff]
                %305 = vst [vmem:[%s231 + $0x120] sm:$0xff] %v304
                %v306 = vld [vmem:[%s230 + $0x128] sm:$0xff]
                %307 = vst [vmem:[%s231 + $0x128] sm:$0xff] %v306
                %v308 = vld [vmem:[%s230 + $0x130] sm:$0xff]
                %309 = vst [vmem:[%s231 + $0x130] sm:$0xff] %v308
                %v310 = vld [vmem:[%s230 + $0x138] sm:$0xff]
                %311 = vst [vmem:[%s231 + $0x138] sm:$0xff] %v310
                %v312 = vld [vmem:[%s230 + $0x140] sm:$0xff]
                %313 = vst [vmem:[%s231 + $0x140] sm:$0xff] %v312
                %v314 = vld [vmem:[%s230 + $0x148] sm:$0xff]
                %315 = vst [vmem:[%s231 + $0x148] sm:$0xff] %v314
                %v316 = vld [vmem:[%s230 + $0x150] sm:$0xff]
                %317 = vst [vmem:[%s231 + $0x150] sm:$0xff] %v316
                %v318 = vld [vmem:[%s230 + $0x158] sm:$0xff]
                %319 = vst [vmem:[%s231 + $0x158] sm:$0xff] %v318
                %v320 = vld [vmem:[%s230 + $0x160] sm:$0xff]
                %321 = vst [vmem:[%s231 + $0x160] sm:$0xff] %v320
                %v322 = vld [vmem:[%s230 + $0x168] sm:$0xff]
                %323 = vst [vmem:[%s231 + $0x168] sm:$0xff] %v322
                %v324 = vld [vmem:[%s230 + $0x170] sm:$0xff]
                %325 = vst [vmem:[%s231 + $0x170] sm:$0xff] %v324
                %v326 = vld [vmem:[%s230 + $0x178] sm:$0xff]
                %327 = vst [vmem:[%s231 + $0x178] sm:$0xff] %v326
                %v328 = vld [vmem:[%s230 + $0x180] sm:$0xff]
                %329 = vst [vmem:[%s231 + $0x180] sm:$0xff] %v328
                %v330 = vld [vmem:[%s230 + $0x188] sm:$0xff]
                %331 = vst [vmem:[%s231 + $0x188] sm:$0xff] %v330
                %v332 = vld [vmem:[%s230 + $0x190] sm:$0xff]
                %333 = vst [vmem:[%s231 + $0x190] sm:$0xff] %v332
                %v334 = vld [vmem:[%s230 + $0x198] sm:$0xff]
                %335 = vst [vmem:[%s231 + $0x198] sm:$0xff] %v334
                %v336 = vld [vmem:[%s230 + $0x1a0] sm:$0xff]
                %337 = vst [vmem:[%s231 + $0x1a0] sm:$0xff] %v336
                %v338 = vld [vmem:[%s230 + $0x1a8] sm:$0xff]
                %339 = vst [vmem:[%s231 + $0x1a8] sm:$0xff] %v338
                %v340 = vld [vmem:[%s230 + $0x1b0] sm:$0xff]
                %341 = vst [vmem:[%s231 + $0x1b0] sm:$0xff] %v340
                %v342 = vld [vmem:[%s230 + $0x1b8] sm:$0xff]
                %343 = vst [vmem:[%s231 + $0x1b8] sm:$0xff] %v342
                %v344 = vld [vmem:[%s230 + $0x1c0] sm:$0xff]
                %345 = vst [vmem:[%s231 + $0x1c0] sm:$0xff] %v344
                %v346 = vld [vmem:[%s230 + $0x1c8] sm:$0xff]
                %347 = vst [vmem:[%s231 + $0x1c8] sm:$0xff] %v346
                %v348 = vld [vmem:[%s230 + $0x1d0] sm:$0xff]
                %349 = vst [vmem:[%s231 + $0x1d0] sm:$0xff] %v348
                %v350 = vld [vmem:[%s230 + $0x1d8] sm:$0xff]
                %351 = vst [vmem:[%s231 + $0x1d8] sm:$0xff] %v350
                %v352 = vld [vmem:[%s230 + $0x1e0] sm:$0xff]
                %353 = vst [vmem:[%s231 + $0x1e0] sm:$0xff] %v352
                %v354 = vld [vmem:[%s230 + $0x1e8] sm:$0xff]
                %355 = vst [vmem:[%s231 + $0x1e8] sm:$0xff] %v354
                %v356 = vld [vmem:[%s230 + $0x1f0] sm:$0xff]
                %357 = vst [vmem:[%s231 + $0x1f0] sm:$0xff] %v356
                %v358 = vld [vmem:[%s230 + $0x1f8] sm:$0xff]
                %359 = vst [vmem:[%s231 + $0x1f8] sm:$0xff] %v358
                %v360 = vld [vmem:[%s230 + $0x800] sm:$0xff]
                %361 = vst [vmem:[%s231 + $0x200] sm:$0xff] %v360
                %v362 = vld [vmem:[%s230 + $0x808] sm:$0xff]
                %363 = vst [vmem:[%s231 + $0x208] sm:$0xff] %v362
                %v364 = vld [vmem:[%s230 + $0x810] sm:$0xff]
                %365 = vst [vmem:[%s231 + $0x210] sm:$0xff] %v364
                %v366 = vld [vmem:[%s230 + $0x818] sm:$0xff]
                %367 = vst [vmem:[%s231 + $0x218] sm:$0xff] %v366
                %v368 = vld [vmem:[%s230 + $0x820] sm:$0xff]
                %369 = vst [vmem:[%s231 + $0x220] sm:$0xff] %v368
                %v370 = vld [vmem:[%s230 + $0x828] sm:$0xff]
                %371 = vst [vmem:[%s231 + $0x228] sm:$0xff] %v370
                %v372 = vld [vmem:[%s230 + $0x830] sm:$0xff]
                %373 = vst [vmem:[%s231 + $0x230] sm:$0xff] %v372
                %v374 = vld [vmem:[%s230 + $0x838] sm:$0xff]
                %375 = vst [vmem:[%s231 + $0x238] sm:$0xff] %v374
                %v376 = vld [vmem:[%s230 + $0x840] sm:$0xff]
                %377 = vst [vmem:[%s231 + $0x240] sm:$0xff] %v376
                %v378 = vld [vmem:[%s230 + $0x848] sm:$0xff]
                %379 = vst [vmem:[%s231 + $0x248] sm:$0xff] %v378
                %v380 = vld [vmem:[%s230 + $0x850] sm:$0xff]
                %381 = vst [vmem:[%s231 + $0x250] sm:$0xff] %v380
                %v382 = vld [vmem:[%s230 + $0x858] sm:$0xff]
                %383 = vst [vmem:[%s231 + $0x258] sm:$0xff] %v382
                %v384 = vld [vmem:[%s230 + $0x860] sm:$0xff]
                %385 = vst [vmem:[%s231 + $0x260] sm:$0xff] %v384
                %v386 = vld [vmem:[%s230 + $0x868] sm:$0xff]
                %387 = vst [vmem:[%s231 + $0x268] sm:$0xff] %v386
                %v388 = vld [vmem:[%s230 + $0x870] sm:$0xff]
                %389 = vst [vmem:[%s231 + $0x270] sm:$0xff] %v388
                %v390 = vld [vmem:[%s230 + $0x878] sm:$0xff]
                %391 = vst [vmem:[%s231 + $0x278] sm:$0xff] %v390
                %v392 = vld [vmem:[%s230 + $0x880] sm:$0xff]
                %393 = vst [vmem:[%s231 + $0x280] sm:$0xff] %v392
                %v394 = vld [vmem:[%s230 + $0x888] sm:$0xff]
                %395 = vst [vmem:[%s231 + $0x288] sm:$0xff] %v394
                %v396 = vld [vmem:[%s230 + $0x890] sm:$0xff]
                %397 = vst [vmem:[%s231 + $0x290] sm:$0xff] %v396
                %v398 = vld [vmem:[%s230 + $0x898] sm:$0xff]
                %399 = vst [vmem:[%s231 + $0x298] sm:$0xff] %v398
                %v400 = vld [vmem:[%s230 + $0x8a0] sm:$0xff]
                %401 = vst [vmem:[%s231 + $0x2a0] sm:$0xff] %v400
                %v402 = vld [vmem:[%s230 + $0x8a8] sm:$0xff]
                %403 = vst [vmem:[%s231 + $0x2a8] sm:$0xff] %v402
                %v404 = vld [vmem:[%s230 + $0x8b0] sm:$0xff]
                %405 = vst [vmem:[%s231 + $0x2b0] sm:$0xff] %v404
                %v406 = vld [vmem:[%s230 + $0x8b8] sm:$0xff]
                %407 = vst [vmem:[%s231 + $0x2b8] sm:$0xff] %v406
                %v408 = vld [vmem:[%s230 + $0x8c0] sm:$0xff]
                %409 = vst [vmem:[%s231 + $0x2c0] sm:$0xff] %v408
                %v410 = vld [vmem:[%s230 + $0x8c8] sm:$0xff]
                %411 = vst [vmem:[%s231 + $0x2c8] sm:$0xff] %v410
                %v412 = vld [vmem:[%s230 + $0x8d0] sm:$0xff]
                %413 = vst [vmem:[%s231 + $0x2d0] sm:$0xff] %v412
                %v414 = vld [vmem:[%s230 + $0x8d8] sm:$0xff]
                %415 = vst [vmem:[%s231 + $0x2d8] sm:$0xff] %v414
                %v416 = vld [vmem:[%s230 + $0x8e0] sm:$0xff]
                %417 = vst [vmem:[%s231 + $0x2e0] sm:$0xff] %v416
                %v418 = vld [vmem:[%s230 + $0x8e8] sm:$0xff]
                %419 = vst [vmem:[%s231 + $0x2e8] sm:$0xff] %v418
                %v420 = vld [vmem:[%s230 + $0x8f0] sm:$0xff]
                %421 = vst [vmem:[%s231 + $0x2f0] sm:$0xff] %v420
                %v422 = vld [vmem:[%s230 + $0x8f8] sm:$0xff]
                %423 = vst [vmem:[%s231 + $0x2f8] sm:$0xff] %v422
                %v424 = vld [vmem:[%s230 + $0x900] sm:$0xff]
                %425 = vst [vmem:[%s231 + $0x300] sm:$0xff] %v424
                %v426 = vld [vmem:[%s230 + $0x908] sm:$0xff]
                %427 = vst [vmem:[%s231 + $0x308] sm:$0xff] %v426
                %v428 = vld [vmem:[%s230 + $0x910] sm:$0xff]
                %429 = vst [vmem:[%s231 + $0x310] sm:$0xff] %v428
                %v430 = vld [vmem:[%s230 + $0x918] sm:$0xff]
                %431 = vst [vmem:[%s231 + $0x318] sm:$0xff] %v430
                %v432 = vld [vmem:[%s230 + $0x920] sm:$0xff]
                %433 = vst [vmem:[%s231 + $0x320] sm:$0xff] %v432
                %v434 = vld [vmem:[%s230 + $0x928] sm:$0xff]
                %435 = vst [vmem:[%s231 + $0x328] sm:$0xff] %v434
                %v436 = vld [vmem:[%s230 + $0x930] sm:$0xff]
                %437 = vst [vmem:[%s231 + $0x330] sm:$0xff] %v436
                %v438 = vld [vmem:[%s230 + $0x938] sm:$0xff]
                %439 = vst [vmem:[%s231 + $0x338] sm:$0xff] %v438
                %v440 = vld [vmem:[%s230 + $0x940] sm:$0xff]
                %441 = vst [vmem:[%s231 + $0x340] sm:$0xff] %v440
                %v442 = vld [vmem:[%s230 + $0x948] sm:$0xff]
                %443 = vst [vmem:[%s231 + $0x348] sm:$0xff] %v442
                %v444 = vld [vmem:[%s230 + $0x950] sm:$0xff]
                %445 = vst [vmem:[%s231 + $0x350] sm:$0xff] %v444
                %v446 = vld [vmem:[%s230 + $0x958] sm:$0xff]
                %447 = vst [vmem:[%s231 + $0x358] sm:$0xff] %v446
                %v448 = vld [vmem:[%s230 + $0x960] sm:$0xff]
                %449 = vst [vmem:[%s231 + $0x360] sm:$0xff] %v448
                %v450 = vld [vmem:[%s230 + $0x968] sm:$0xff]
                %451 = vst [vmem:[%s231 + $0x368] sm:$0xff] %v450
                %v452 = vld [vmem:[%s230 + $0x970] sm:$0xff]
                %453 = vst [vmem:[%s231 + $0x370] sm:$0xff] %v452
                %v454 = vld [vmem:[%s230 + $0x978] sm:$0xff]
                %455 = vst [vmem:[%s231 + $0x378] sm:$0xff] %v454
                %v456 = vld [vmem:[%s230 + $0x980] sm:$0xff]
                %457 = vst [vmem:[%s231 + $0x380] sm:$0xff] %v456
                %v458 = vld [vmem:[%s230 + $0x988] sm:$0xff]
                %459 = vst [vmem:[%s231 + $0x388] sm:$0xff] %v458
                %v460 = vld [vmem:[%s230 + $0x990] sm:$0xff]
                %461 = vst [vmem:[%s231 + $0x390] sm:$0xff] %v460
                %v462 = vld [vmem:[%s230 + $0x998] sm:$0xff]
                %463 = vst [vmem:[%s231 + $0x398] sm:$0xff] %v462
                %v464 = vld [vmem:[%s230 + $0x9a0] sm:$0xff]
                %465 = vst [vmem:[%s231 + $0x3a0] sm:$0xff] %v464
                %v466 = vld [vmem:[%s230 + $0x9a8] sm:$0xff]
                %467 = vst [vmem:[%s231 + $0x3a8] sm:$0xff] %v466
                %v468 = vld [vmem:[%s230 + $0x9b0] sm:$0xff]
                %469 = vst [vmem:[%s231 + $0x3b0] sm:$0xff] %v468
                %v470 = vld [vmem:[%s230 + $0x9b8] sm:$0xff]
                %471 = vst [vmem:[%s231 + $0x3b8] sm:$0xff] %v470
                %v472 = vld [vmem:[%s230 + $0x9c0] sm:$0xff]
                %473 = vst [vmem:[%s231 + $0x3c0] sm:$0xff] %v472
                %v474 = vld [vmem:[%s230 + $0x9c8] sm:$0xff]
                %475 = vst [vmem:[%s231 + $0x3c8] sm:$0xff] %v474
                %v476 = vld [vmem:[%s230 + $0x9d0] sm:$0xff]
                %477 = vst [vmem:[%s231 + $0x3d0] sm:$0xff] %v476
                %v478 = vld [vmem:[%s230 + $0x9d8] sm:$0xff]
                %479 = vst [vmem:[%s231 + $0x3d8] sm:$0xff] %v478
                %v480 = vld [vmem:[%s230 + $0x9e0] sm:$0xff]
                %481 = vst [vmem:[%s231 + $0x3e0] sm:$0xff] %v480
                %v482 = vld [vmem:[%s230 + $0x9e8] sm:$0xff]
                %483 = vst [vmem:[%s231 + $0x3e8] sm:$0xff] %v482
                %v484 = vld [vmem:[%s230 + $0x9f0] sm:$0xff]
                %485 = vst [vmem:[%s231 + $0x3f0] sm:$0xff] %v484
                %v486 = vld [vmem:[%s230 + $0x9f8] sm:$0xff]
                %487 = vst [vmem:[%s231 + $0x3f8] sm:$0xff] %v486
              $region49: #{head_forward.1} parent=43 // loop_footer
                %s229 = sadd.s32 1, %s225
              $region50: #{head_forward.1} parent=43 // loop_footer_branch
                %224 = sbr.rel target = $region46
              $region51: #{head_forward.1} parent=43 // loop_exit
                _
            $region44: #{head_forward.1} parent=35 // pred_fallthru
              _
          $region36: #{head_forward.1} parent=31 // pred_fallthru
            _
          %756 = vnop
        $region32: #{head_forward.1} parent=27 // pred_fallthru
          _
        // Predicated region
        $region67: #{head_forward.1} parent=27 // pred_check
          %p757 = pneg %p73
        $region68: #{head_forward.1} parent=27 // pred_check_branch
          %759 = sbr.rel (%p757) target = $region70
        $region69: #{head_forward.1} parent=27 // pred_region
          %s760 = smul.u32 64, %s21
          %p761 = scmp.lt.s32.totalorder %s760, 255
          %s762 = scalar_select %p761, %s760, 255
          %s763 = smul.addr %s762, 8
          %s764 = scalar_lea.vmem %s1, %s763
          %s765 = smul.u32 64, %s21
        $region70: #{head_forward.1} parent=27 // pred_fallthru
          _
      $region28: #{head_forward.1} parent=5 // pred_fallthru
        _
      %p766 = scmp.le.s32.totalorder 1, %s13
      %p767 = scmp.lt.s32.totalorder %s13, 5
      %p768 = pnand %p766, %p767
      %p769 = pneg %p768
      // Predicated region
      $region71: #{head_forward.1} parent=5 // pred_check
        _
      $region72: #{head_forward.1} parent=5 // pred_check_branch
        %771 = sbr.rel (%p768) target = $region74
      $region73: #{head_forward.1} parent=5 // pred_region
        %s772 = ssub.s32 %s13, 1
        %s773 = sand.u32 %s40, 1
        %s774 = sand.u32 %s40, 1
        %s775 = smul.addr %s774, 1024
        %s776 = scalar_lea.vmem [#allocation3], %s775
        // Predicated region
        $region75: #{head_forward.1} parent=73 // pred_check
          %p777 = pneg %p53
        $region76: #{head_forward.1} parent=73 // pred_check_branch
          %779 = sbr.rel (%p777) target = $region78
        $region77: #{head_forward.1} parent=73 // pred_region
          _
        $region78: #{head_forward.1} parent=73 // pred_fallthru
          _
        // Predicated region
        $region79: #{head_forward.1} parent=73 // pred_check
          %p780 = pneg %p142
        $region80: #{head_forward.1} parent=73 // pred_check_branch
          %782 = sbr.rel (%p780) target = $region82
        $region81: #{head_forward.1} parent=73 // pred_region
          %783 = dma.done [#allocation6], 16
        $region82: #{head_forward.1} parent=73 // pred_fallthru
          _
        %784 = sfence
        %s785 = sand.u32 %s40, 1
        %s786 = sand.u32 %s40, 1
        %s787 = smul.addr %s786, 1024
        %s788 = scalar_lea.vmem [#allocation3], %s787
        %p789 = pneg %p53
        %p790 = pneg %p50
        %s791 = smul.u32 64, %s23
        %p792 = scmp.lt.s32.totalorder %s791, 255
        %s793 = scalar_select %p792, %s791, 255
        %s794 = smul.addr %s793, 8
        %s795 = scalar_lea.vmem %s1, %s794
        %p796 = pneg %p79
        %p797 = pneg %p76
        %p798 = pneg %p100
        %p799 = pneg %p97
        %p800 = pneg %p121
        %p801 = pneg %p118
        %p802 = pneg %p142
        %p803 = pneg %p139
        %p804 = pneg %p168
        %p805 = pneg %p165
        %s806 = smul.u32 2, %s22
        %s807 = smul.u32 64, %s23
        %s808 = smul.u32 64, %s23
        %p809 = scmp.lt.s32.totalorder %s808, 255
        %s810 = scalar_select %p809, %s808, 255
        %s811 = smul.addr %s810, 8
        %s812 = scalar_lea.vmem %s1, %s811
        %s813 = smul.u32 64, %s23
        %p814 = scmp.eq.s32.totalorder %s23, 0
        // Predicated region
        $region83: #{head_forward.1} parent=73 // pred_check
          %p815 = pneg %p814
        $region84: #{head_forward.1} parent=73 // pred_check_branch
          %817 = sbr.rel (%p815) target = $region86
        $region85: #{head_forward.1} parent=73 // pred_region
          %vm818 = vcmask 123904
          %819 = vst.msk [vmem:[#allocation2] sm:$0x3] %vm818, 0.0
        $region86: #{head_forward.1} parent=73 // pred_fallthru
          _
        %v820 = vld [vmem:[#allocation2] sm:$0x3]
        %v821 = vld [vmem:[%s776] sm:$0xff]
        %v822 = vld [vmem:[%s776 + $0x8] sm:$0xff]
        %v823 = vld [vmem:[%s776 + $0x10] sm:$0xff]
        %v824 = vld [vmem:[%s776 + $0x18] sm:$0xff]
        %v825 = vld [vmem:[%s776 + $0x20] sm:$0xff]
        %v826 = vld [vmem:[%s776 + $0x28] sm:$0xff]
        %v827 = vld [vmem:[%s776 + $0x30] sm:$0xff]
        %v828 = vld [vmem:[%s776 + $0x38] sm:$0xff]
        %v829 = vld [vmem:[%s776 + $0x40] sm:$0xff]
        %v830 = vld [vmem:[%s776 + $0x48] sm:$0xff]
        %v831 = vld [vmem:[%s776 + $0x50] sm:$0xff]
        %v832 = vld [vmem:[%s776 + $0x58] sm:$0xff]
        %v833 = vld [vmem:[%s776 + $0x60] sm:$0xff]
        %v834 = vld [vmem:[%s776 + $0x68] sm:$0xff]
        %v835 = vld [vmem:[%s776 + $0x70] sm:$0xff]
        %v836 = vld [vmem:[%s776 + $0x78] sm:$0xff]
        %v837 = vld [vmem:[%s776 + $0x200] sm:$0xff]
        %v838 = vld [vmem:[%s776 + $0x208] sm:$0xff]
        %v839 = vld [vmem:[%s776 + $0x210] sm:$0xff]
        %v840 = vld [vmem:[%s776 + $0x218] sm:$0xff]
        %v841 = vld [vmem:[%s776 + $0x220] sm:$0xff]
        %v842 = vld [vmem:[%s776 + $0x228] sm:$0xff]
        %v843 = vld [vmem:[%s776 + $0x230] sm:$0xff]
        %v844 = vld [vmem:[%s776 + $0x238] sm:$0xff]
        %v845 = vld [vmem:[%s776 + $0x240] sm:$0xff]
        %v846 = vld [vmem:[%s776 + $0x248] sm:$0xff]
        %v847 = vld [vmem:[%s776 + $0x250] sm:$0xff]
        %v848 = vld [vmem:[%s776 + $0x258] sm:$0xff]
        %v849 = vld [vmem:[%s776 + $0x260] sm:$0xff]
        %v850 = vld [vmem:[%s776 + $0x268] sm:$0xff]
        %v851 = vld [vmem:[%s776 + $0x270] sm:$0xff]
        %v852 = vld [vmem:[%s776 + $0x278] sm:$0xff]
        %vm853 = vcmask 130048
        %v854 = vsel %vm853, %v821, -inf
        %855 = vmax.xlane.f32.xlu0 %v854
        %v856 = vpop.xlane.xlu0 %855
        %v857 = vsel %vm853, %v822, -inf
        %858 = vmax.xlane.f32.xlu0 %v857
        %v859 = vpop.xlane.xlu0 %858
        %v860 = vsel %vm853, %v823, -inf
        %861 = vmax.xlane.f32.xlu0 %v860
        %v862 = vpop.xlane.xlu0 %861
        %v863 = vsel %vm853, %v824, -inf
        %864 = vmax.xlane.f32.xlu0 %v863
        %v865 = vpop.xlane.xlu0 %864
        %v866 = vsel %vm853, %v825, -inf
        %867 = vmax.xlane.f32.xlu0 %v866
        %v868 = vpop.xlane.xlu0 %867
        %v869 = vsel %vm853, %v826, -inf
        %870 = vmax.xlane.f32.xlu0 %v869
        %v871 = vpop.xlane.xlu0 %870
        %v872 = vsel %vm853, %v827, -inf
        %873 = vmax.xlane.f32.xlu0 %v872
        %v874 = vpop.xlane.xlu0 %873
        %v875 = vsel %vm853, %v828, -inf
        %876 = vmax.xlane.f32.xlu0 %v875
        %v877 = vpop.xlane.xlu0 %876
        %v878 = vsel %vm853, %v829, -inf
        %879 = vmax.xlane.f32.xlu0 %v878
        %v880 = vpop.xlane.xlu0 %879
        %v881 = vsel %vm853, %v830, -inf
        %882 = vmax.xlane.f32.xlu0 %v881
        %v883 = vpop.xlane.xlu0 %882
        %v884 = vsel %vm853, %v831, -inf
        %885 = vmax.xlane.f32.xlu0 %v884
        %v886 = vpop.xlane.xlu0 %885
        %v887 = vsel %vm853, %v832, -inf
        %888 = vmax.xlane.f32.xlu0 %v887
        %v889 = vpop.xlane.xlu0 %888
        %v890 = vsel %vm853, %v833, -inf
        %891 = vmax.xlane.f32.xlu0 %v890
        %v892 = vpop.xlane.xlu0 %891
        %v893 = vsel %vm853, %v834, -inf
        %894 = vmax.xlane.f32.xlu0 %v893
        %v895 = vpop.xlane.xlu0 %894
        %v896 = vsel %vm853, %v835, -inf
        %897 = vmax.xlane.f32.xlu0 %v896
        %v898 = vpop.xlane.xlu0 %897
        %v899 = vsel %vm853, %v836, -inf
        %900 = vmax.xlane.f32.xlu0 %v899
        %v901 = vpop.xlane.xlu0 %900
        %v902 = vsel %vm853, %v837, -inf
        %903 = vmax.xlane.f32.xlu0 %v902
        %v904 = vpop.xlane.xlu0 %903
        %v905 = vsel %vm853, %v838, -inf
        %906 = vmax.xlane.f32.xlu0 %v905
        %v907 = vpop.xlane.xlu0 %906
        %v908 = vsel %vm853, %v839, -inf
        %909 = vmax.xlane.f32.xlu0 %v908
        %v910 = vpop.xlane.xlu0 %909
        %v911 = vsel %vm853, %v840, -inf
        %912 = vmax.xlane.f32.xlu0 %v911
        %v913 = vpop.xlane.xlu0 %912
        %v914 = vsel %vm853, %v841, -inf
        %915 = vmax.xlane.f32.xlu0 %v914
        %v916 = vpop.xlane.xlu0 %915
        %v917 = vsel %vm853, %v842, -inf
        %918 = vmax.xlane.f32.xlu0 %v917
        %v919 = vpop.xlane.xlu0 %918
        %v920 = vsel %vm853, %v843, -inf
        %921 = vmax.xlane.f32.xlu0 %v920
        %v922 = vpop.xlane.xlu0 %921
        %v923 = vsel %vm853, %v844, -inf
        %924 = vmax.xlane.f32.xlu0 %v923
        %v925 = vpop.xlane.xlu0 %924
        %v926 = vsel %vm853, %v845, -inf
        %927 = vmax.xlane.f32.xlu0 %v926
        %v928 = vpop.xlane.xlu0 %927
        %v929 = vsel %vm853, %v846, -inf
        %930 = vmax.xlane.f32.xlu0 %v929
        %v931 = vpop.xlane.xlu0 %930
        %v932 = vsel %vm853, %v847, -inf
        %933 = vmax.xlane.f32.xlu0 %v932
        %v934 = vpop.xlane.xlu0 %933
        %v935 = vsel %vm853, %v848, -inf
        %936 = vmax.xlane.f32.xlu0 %v935
        %v937 = vpop.xlane.xlu0 %936
        %v938 = vsel %vm853, %v849, -inf
        %939 = vmax.xlane.f32.xlu0 %v938
        %v940 = vpop.xlane.xlu0 %939
        %v941 = vsel %vm853, %v850, -inf
        %942 = vmax.xlane.f32.xlu0 %v941
        %v943 = vpop.xlane.xlu0 %942
        %v944 = vsel %vm853, %v851, -inf
        %945 = vmax.xlane.f32.xlu0 %v944
        %v946 = vpop.xlane.xlu0 %945
        %v947 = vsel %vm853, %v852, -inf
        %948 = vmax.xlane.f32.xlu0 %v947
        %v949 = vpop.xlane.xlu0 %948
        %v950 = vld [vmem:[%s812] sm:$0xff]
        %v951 = vld [vmem:[%s812 + $0x8] sm:$0xff]
        %v952 = vld [vmem:[%s812 + $0x10] sm:$0xff]
        %v953 = vld [vmem:[%s812 + $0x18] sm:$0xff]
        %v954 = vld [vmem:[%s812 + $0x20] sm:$0xff]
        %v955 = vld [vmem:[%s812 + $0x28] sm:$0xff]
        %v956 = vld [vmem:[%s812 + $0x30] sm:$0xff]
        %v957 = vld [vmem:[%s812 + $0x38] sm:$0xff]
        %v958 = vld [vmem:[%s812 + $0x40] sm:$0xff]
        %v959 = vld [vmem:[%s812 + $0x48] sm:$0xff]
        %v960 = vld [vmem:[%s812 + $0x50] sm:$0xff]
        %v961 = vld [vmem:[%s812 + $0x58] sm:$0xff]
        %v962 = vld [vmem:[%s812 + $0x60] sm:$0xff]
        %v963 = vld [vmem:[%s812 + $0x68] sm:$0xff]
        %v964 = vld [vmem:[%s812 + $0x70] sm:$0xff]
        %v965 = vld [vmem:[%s812 + $0x78] sm:$0xff]
        %s966 = scalar_lea.vmem %s776, 128 [#allocation3]
        %v967 = vld [vmem:[%s966] sm:$0xff]
        %v968 = vld [vmem:[%s966 + $0x8] sm:$0xff]
        %v969 = vld [vmem:[%s966 + $0x10] sm:$0xff]
        %v970 = vld [vmem:[%s966 + $0x18] sm:$0xff]
        %v971 = vld [vmem:[%s966 + $0x20] sm:$0xff]
        %v972 = vld [vmem:[%s966 + $0x28] sm:$0xff]
        %v973 = vld [vmem:[%s966 + $0x30] sm:$0xff]
        %v974 = vld [vmem:[%s966 + $0x38] sm:$0xff]
        %v975 = vld [vmem:[%s966 + $0x40] sm:$0xff]
        %v976 = vld [vmem:[%s966 + $0x48] sm:$0xff]
        %v977 = vld [vmem:[%s966 + $0x50] sm:$0xff]
        %v978 = vld [vmem:[%s966 + $0x58] sm:$0xff]
        %v979 = vld [vmem:[%s966 + $0x60] sm:$0xff]
        %v980 = vld [vmem:[%s966 + $0x68] sm:$0xff]
        %v981 = vld [vmem:[%s966 + $0x70] sm:$0xff]
        %v982 = vld [vmem:[%s966 + $0x78] sm:$0xff]
        %v983 = vld [vmem:[%s966 + $0x200] sm:$0xff]
        %v984 = vld [vmem:[%s966 + $0x208] sm:$0xff]
        %v985 = vld [vmem:[%s966 + $0x210] sm:$0xff]
        %v986 = vld [vmem:[%s966 + $0x218] sm:$0xff]
        %v987 = vld [vmem:[%s966 + $0x220] sm:$0xff]
        %v988 = vld [vmem:[%s966 + $0x228] sm:$0xff]
        %v989 = vld [vmem:[%s966 + $0x230] sm:$0xff]
        %v990 = vld [vmem:[%s966 + $0x238] sm:$0xff]
        %v991 = vld [vmem:[%s966 + $0x240] sm:$0xff]
        %v992 = vld [vmem:[%s966 + $0x248] sm:$0xff]
        %v993 = vld [vmem:[%s966 + $0x250] sm:$0xff]
        %v994 = vld [vmem:[%s966 + $0x258] sm:$0xff]
        %v995 = vld [vmem:[%s966 + $0x260] sm:$0xff]
        %v996 = vld [vmem:[%s966 + $0x268] sm:$0xff]
        %v997 = vld [vmem:[%s966 + $0x270] sm:$0xff]
        %v998 = vld [vmem:[%s966 + $0x278] sm:$0xff]
        %v999 = vsel %vm853, %v967, -inf
        %1000 = vmax.xlane.f32.xlu0 %v999
        %v1001 = vpop.xlane.xlu0 %1000
        %v1002 = vsel %vm853, %v968, -inf
        %1003 = vmax.xlane.f32.xlu0 %v1002
        %v1004 = vpop.xlane.xlu0 %1003
        %v1005 = vsel %vm853, %v969, -inf
        %1006 = vmax.xlane.f32.xlu0 %v1005
        %v1007 = vpop.xlane.xlu0 %1006
        %v1008 = vsel %vm853, %v970, -inf
        %1009 = vmax.xlane.f32.xlu0 %v1008
        %v1010 = vpop.xlane.xlu0 %1009
        %v1011 = vsel %vm853, %v971, -inf
        %1012 = vmax.xlane.f32.xlu0 %v1011
        %v1013 = vpop.xlane.xlu0 %1012
        %v1014 = vsel %vm853, %v972, -inf
        %1015 = vmax.xlane.f32.xlu0 %v1014
        %v1016 = vpop.xlane.xlu0 %1015
        %v1017 = vsel %vm853, %v973, -inf
        %1018 = vmax.xlane.f32.xlu0 %v1017
        %v1019 = vpop.xlane.xlu0 %1018
        %v1020 = vsel %vm853, %v974, -inf
        %1021 = vmax.xlane.f32.xlu0 %v1020
        %v1022 = vpop.xlane.xlu0 %1021
        %v1023 = vsel %vm853, %v975, -inf
        %1024 = vmax.xlane.f32.xlu0 %v1023
        %v1025 = vpop.xlane.xlu0 %1024
        %v1026 = vsel %vm853, %v976, -inf
        %1027 = vmax.xlane.f32.xlu0 %v1026
        %v1028 = vpop.xlane.xlu0 %1027
        %v1029 = vsel %vm853, %v977, -inf
        %1030 = vmax.xlane.f32.xlu0 %v1029
        %v1031 = vpop.xlane.xlu0 %1030
        %v1032 = vsel %vm853, %v978, -inf
        %1033 = vmax.xlane.f32.xlu0 %v1032
        %v1034 = vpop.xlane.xlu0 %1033
        %v1035 = vsel %vm853, %v979, -inf
        %1036 = vmax.xlane.f32.xlu0 %v1035
        %v1037 = vpop.xlane.xlu0 %1036
        %v1038 = vsel %vm853, %v980, -inf
        %1039 = vmax.xlane.f32.xlu0 %v1038
        %v1040 = vpop.xlane.xlu0 %1039
        %v1041 = vsel %vm853, %v981, -inf
        %1042 = vmax.xlane.f32.xlu0 %v1041
        %v1043 = vpop.xlane.xlu0 %1042
        %v1044 = vsel %vm853, %v982, -inf
        %1045 = vmax.xlane.f32.xlu0 %v1044
        %v1046 = vpop.xlane.xlu0 %1045
        %v1047 = vsel %vm853, %v983, -inf
        %1048 = vmax.xlane.f32.xlu0 %v1047
        %v1049 = vpop.xlane.xlu0 %1048
        %v1050 = vsel %vm853, %v984, -inf
        %1051 = vmax.xlane.f32.xlu0 %v1050
        %v1052 = vpop.xlane.xlu0 %1051
        %v1053 = vsel %vm853, %v985, -inf
        %1054 = vmax.xlane.f32.xlu0 %v1053
        %v1055 = vpop.xlane.xlu0 %1054
        %v1056 = vsel %vm853, %v986, -inf
        %1057 = vmax.xlane.f32.xlu0 %v1056
        %v1058 = vpop.xlane.xlu0 %1057
        %v1059 = vsel %vm853, %v987, -inf
        %1060 = vmax.xlane.f32.xlu0 %v1059
        %v1061 = vpop.xlane.xlu0 %1060
        %v1062 = vsel %vm853, %v988, -inf
        %1063 = vmax.xlane.f32.xlu0 %v1062
        %v1064 = vpop.xlane.xlu0 %1063
        %v1065 = vsel %vm853, %v989, -inf
        %1066 = vmax.xlane.f32.xlu0 %v1065
        %v1067 = vpop.xlane.xlu0 %1066
        %v1068 = vsel %vm853, %v990, -inf
        %1069 = vmax.xlane.f32.xlu0 %v1068
        %v1070 = vpop.xlane.xlu0 %1069
        %v1071 = vsel %vm853, %v991, -inf
        %1072 = vmax.xlane.f32.xlu0 %v1071
        %v1073 = vpop.xlane.xlu0 %1072
        %v1074 = vsel %vm853, %v992, -inf
        %1075 = vmax.xlane.f32.xlu0 %v1074
        %v1076 = vpop.xlane.xlu0 %1075
        %v1077 = vsel %vm853, %v993, -inf
        %1078 = vmax.xlane.f32.xlu0 %v1077
        %v1079 = vpop.xlane.xlu0 %1078
        %v1080 = vsel %vm853, %v994, -inf
        %1081 = vmax.xlane.f32.xlu0 %v1080
        %v1082 = vpop.xlane.xlu0 %1081
        %v1083 = vsel %vm853, %v995, -inf
        %1084 = vmax.xlane.f32.xlu0 %v1083
        %v1085 = vpop.xlane.xlu0 %1084
        %v1086 = vsel %vm853, %v996, -inf
        %1087 = vmax.xlane.f32.xlu0 %v1086
        %v1088 = vpop.xlane.xlu0 %1087
        %v1089 = vsel %vm853, %v997, -inf
        %1090 = vmax.xlane.f32.xlu0 %v1089
        %v1091 = vpop.xlane.xlu0 %1090
        %v1092 = vsel %vm853, %v998, -inf
        %1093 = vmax.xlane.f32.xlu0 %v1092
        %v1094 = vpop.xlane.xlu0 %1093
        %s1095 = scalar_lea.vmem %s812, 128
        %v1096 = vld [vmem:[%s1095] sm:$0xff]
        %v1097 = vld [vmem:[%s1095 + $0x8] sm:$0xff]
        %v1098 = vld [vmem:[%s1095 + $0x10] sm:$0xff]
        %v1099 = vld [vmem:[%s1095 + $0x18] sm:$0xff]
        %v1100 = vld [vmem:[%s1095 + $0x20] sm:$0xff]
        %v1101 = vld [vmem:[%s1095 + $0x28] sm:$0xff]
        %v1102 = vld [vmem:[%s1095 + $0x30] sm:$0xff]
        %v1103 = vld [vmem:[%s1095 + $0x38] sm:$0xff]
        %v1104 = vld [vmem:[%s1095 + $0x40] sm:$0xff]
        %v1105 = vld [vmem:[%s1095 + $0x48] sm:$0xff]
        %v1106 = vld [vmem:[%s1095 + $0x50] sm:$0xff]
        %v1107 = vld [vmem:[%s1095 + $0x58] sm:$0xff]
        %v1108 = vld [vmem:[%s1095 + $0x60] sm:$0xff]
        %v1109 = vld [vmem:[%s1095 + $0x68] sm:$0xff]
        %v1110 = vld [vmem:[%s1095 + $0x70] sm:$0xff]
        %v1111 = vld [vmem:[%s1095 + $0x78] sm:$0xff]
        %v1144 = vlaneseq
        %v1145 = vand.u32 %v1144, 127
        %v1146 = vlaneseq
        %v1147 = vshrl.u32 %v1146, 7
        %v1148 = vsub.s32 %v1145, %v1147
        %v1149 = vrot.slane %v1001, %v1148
        %v1150 = vadd.s32 %v1145, 4294967288
        %v1151 = vlaneseq
        %v1152 = vshrl.u32 %v1151, 7
        %v1153 = vsub.s32 %v1150, %v1152
        %v1154 = vrot.slane %v1004, %v1153
        %vm1155 = vcmask 130112
        %v1156 = vsel %vm1155, %v1154, %v1149
        %v1157 = vadd.s32 %v1145, 4294967280
        %v1158 = vlaneseq
        %v1159 = vshrl.u32 %v1158, 7
        %v1160 = vsub.s32 %v1157, %v1159
        %v1161 = vrot.slane %v1007, %v1160
        %vm1162 = vcmask 195712
        %v1163 = vsel %vm1162, %v1161, %v1156
        %v1164 = vadd.s32 %v1145, 4294967272
        %v1165 = vlaneseq
        %v1166 = vshrl.u32 %v1165, 7
        %v1167 = vsub.s32 %v1164, %v1166
        %v1168 = vrot.slane %v1010, %v1167
        %vm1169 = vcmask 261312
        %v1170 = vsel %vm1169, %v1168, %v1163
        %v1171 = vadd.s32 %v1145, 4294967264
        %v1172 = vlaneseq
        %v1173 = vshrl.u32 %v1172, 7
        %v1174 = vsub.s32 %v1171, %v1173
        %v1175 = vrot.slane %v1013, %v1174
        %vm1176 = vcmask 326912
        %v1177 = vsel %vm1176, %v1175, %v1170
        %v1178 = vadd.s32 %v1145, 4294967256
        %v1179 = vlaneseq
        %v1180 = vshrl.u32 %v1179, 7
        %v1181 = vsub.s32 %v1178, %v1180
        %v1182 = vrot.slane %v1016, %v1181
        %vm1183 = vcmask 392512
        %v1184 = vsel %vm1183, %v1182, %v1177
        %v1185 = vadd.s32 %v1145, 4294967248
        %v1186 = vlaneseq
        %v1187 = vshrl.u32 %v1186, 7
        %v1188 = vsub.s32 %v1185, %v1187
        %v1189 = vrot.slane %v1019, %v1188
        %vm1190 = vcmask 458112
        %v1191 = vsel %vm1190, %v1189, %v1184
        %v1192 = vadd.s32 %v1145, 4294967240
        %v1193 = vlaneseq
        %v1194 = vshrl.u32 %v1193, 7
        %v1195 = vsub.s32 %v1192, %v1194
        %v1196 = vrot.slane %v1022, %v1195
        %vm1197 = vcmask 523712
        %v1198 = vsel %vm1197, %v1196, %v1191
        %v1199 = vadd.s32 %v1145, 4294967232
        %v1200 = vlaneseq
        %v1201 = vshrl.u32 %v1200, 7
        %v1202 = vsub.s32 %v1199, %v1201
        %v1203 = vrot.slane %v1025, %v1202
        %vm1204 = vcmask 589312
        %v1205 = vsel %vm1204, %v1203, %v1198
        %v1206 = vadd.s32 %v1145, 4294967224
        %v1207 = vlaneseq
        %v1208 = vshrl.u32 %v1207, 7
        %v1209 = vsub.s32 %v1206, %v1208
        %v1210 = vrot.slane %v1028, %v1209
        %vm1211 = vcmask 654912
        %v1212 = vsel %vm1211, %v1210, %v1205
        %v1213 = vadd.s32 %v1145, 4294967216
        %v1214 = vlaneseq
        %v1215 = vshrl.u32 %v1214, 7
        %v1216 = vsub.s32 %v1213, %v1215
        %v1217 = vrot.slane %v1031, %v1216
        %vm1218 = vcmask 720512
        %v1219 = vsel %vm1218, %v1217, %v1212
        %v1220 = vadd.s32 %v1145, 4294967208
        %v1221 = vlaneseq
        %v1222 = vshrl.u32 %v1221, 7
        %v1223 = vsub.s32 %v1220, %v1222
        %v1224 = vrot.slane %v1034, %v1223
        %vm1225 = vcmask 786112
        %v1226 = vsel %vm1225, %v1224, %v1219
        %v1227 = vadd.s32 %v1145, 4294967200
        %v1228 = vlaneseq
        %v1229 = vshrl.u32 %v1228, 7
        %v1230 = vsub.s32 %v1227, %v1229
        %v1231 = vrot.slane %v1037, %v1230
        %vm1232 = vcmask 851712
        %v1233 = vsel %vm1232, %v1231, %v1226
        %v1234 = vadd.s32 %v1145, 4294967192
        %v1235 = vlaneseq
        %v1236 = vshrl.u32 %v1235, 7
        %v1237 = vsub.s32 %v1234, %v1236
        %v1238 = vrot.slane %v1040, %v1237
        %vm1239 = vcmask 917312
        %v1240 = vsel %vm1239, %v1238, %v1233
        %v1241 = vadd.s32 %v1145, 4294967184
        %v1242 = vlaneseq
        %v1243 = vshrl.u32 %v1242, 7
        %v1244 = vsub.s32 %v1241, %v1243
        %v1245 = vrot.slane %v1043, %v1244
        %vm1246 = vcmask 982912
        %v1247 = vsel %vm1246, %v1245, %v1240
        %v1248 = vadd.s32 %v1145, 4294967176
        %v1249 = vlaneseq
        %v1250 = vshrl.u32 %v1249, 7
        %v1251 = vsub.s32 %v1248, %v1250
        %v1252 = vrot.slane %v1046, %v1251
        %vm1253 = vcmask 1048512
        %v1254 = vsel %vm1253, %v1252, %v1247
        %v1255 = vlaneseq
        %v1256 = vshrl.u32 %v1255, 7
        %v1257 = vsub.s32 %v1145, %v1256
        %v1258 = vrot.slane %v1049, %v1257
        %v1259 = vlaneseq
        %v1260 = vshrl.u32 %v1259, 7
        %v1261 = vsub.s32 %v1150, %v1260
        %v1262 = vrot.slane %v1052, %v1261
        %v1263 = vsel %vm1155, %v1262, %v1258
        %v1264 = vlaneseq
        %v1265 = vshrl.u32 %v1264, 7
        %v1266 = vsub.s32 %v1157, %v1265
        %v1267 = vrot.slane %v1055, %v1266
        %v1268 = vsel %vm1162, %v1267, %v1263
        %v1269 = vlaneseq
        %v1270 = vshrl.u32 %v1269, 7
        %v1271 = vsub.s32 %v1164, %v1270
        %v1272 = vrot.slane %v1058, %v1271
        %v1273 = vsel %vm1169, %v1272, %v1268
        %v1274 = vlaneseq
        %v1275 = vshrl.u32 %v1274, 7
        %v1276 = vsub.s32 %v1171, %v1275
        %v1277 = vrot.slane %v1061, %v1276
        %v1278 = vsel %vm1176, %v1277, %v1273
        %v1279 = vlaneseq
        %v1280 = vshrl.u32 %v1279, 7
        %v1281 = vsub.s32 %v1178, %v1280
        %v1282 = vrot.slane %v1064, %v1281
        %v1283 = vsel %vm1183, %v1282, %v1278
        %v1284 = vlaneseq
        %v1285 = vshrl.u32 %v1284, 7
        %v1286 = vsub.s32 %v1185, %v1285
        %v1287 = vrot.slane %v1067, %v1286
        %v1288 = vsel %vm1190, %v1287, %v1283
        %v1289 = vlaneseq
        %v1290 = vshrl.u32 %v1289, 7
        %v1291 = vsub.s32 %v1192, %v1290
        %v1292 = vrot.slane %v1070, %v1291
        %v1293 = vsel %vm1197, %v1292, %v1288
        %v1294 = vlaneseq
        %v1295 = vshrl.u32 %v1294, 7
        %v1296 = vsub.s32 %v1199, %v1295
        %v1297 = vrot.slane %v1073, %v1296
        %v1298 = vsel %vm1204, %v1297, %v1293
        %v1299 = vlaneseq
        %v1300 = vshrl.u32 %v1299, 7
        %v1301 = vsub.s32 %v1206, %v1300
        %v1302 = vrot.slane %v1076, %v1301
        %v1303 = vsel %vm1211, %v1302, %v1298
        %v1304 = vlaneseq
        %v1305 = vshrl.u32 %v1304, 7
        %v1306 = vsub.s32 %v1213, %v1305
        %v1307 = vrot.slane %v1079, %v1306
        %v1308 = vsel %vm1218, %v1307, %v1303
        %v1309 = vlaneseq
        %v1310 = vshrl.u32 %v1309, 7
        %v1311 = vsub.s32 %v1220, %v1310
        %v1312 = vrot.slane %v1082, %v1311
        %v1313 = vsel %vm1225, %v1312, %v1308
        %v1314 = vlaneseq
        %v1315 = vshrl.u32 %v1314, 7
        %v1316 = vsub.s32 %v1227, %v1315
        %v1317 = vrot.slane %v1085, %v1316
        %v1318 = vsel %vm1232, %v1317, %v1313
        %v1319 = vlaneseq
        %v1320 = vshrl.u32 %v1319, 7
        %v1321 = vsub.s32 %v1234, %v1320
        %v1322 = vrot.slane %v1088, %v1321
        %v1323 = vsel %vm1239, %v1322, %v1318
        %v1324 = vlaneseq
        %v1325 = vshrl.u32 %v1324, 7
        %v1326 = vsub.s32 %v1241, %v1325
        %v1327 = vrot.slane %v1091, %v1326
        %v1328 = vsel %vm1246, %v1327, %v1323
        %v1329 = vlaneseq
        %v1330 = vshrl.u32 %v1329, 7
        %v1331 = vsub.s32 %v1248, %v1330
        %v1332 = vrot.slane %v1094, %v1331
        %v1333 = vsel %vm1253, %v1332, %v1328
        %vm1334 = vcmask 1041409
        %v1335 = vsel %vm1334, %v1333, %v1254
        %1337 = vmatprep.subr.mxu0 0.0
        %1338 = vmatpush1.msra.mxu0 %v1096
        %1339 = vmatprep.subr.mxu0 0.0
        %1340 = vmatpush1.msra.mxu0 %v1097
        %1341 = vmatprep.subr.mxu0 0.0
        %1342 = vmatpush1.msra.mxu0 %v1098
        %1343 = vmatprep.subr.mxu0 0.0
        %1344 = vmatpush1.msra.mxu0 %v1099
        %1345 = vmatprep.subr.mxu0 0.0
        %1346 = vmatpush1.msra.mxu0 %v1100
        %1347 = vmatprep.subr.mxu0 0.0
        %1348 = vmatpush1.msra.mxu0 %v1101
        %1349 = vmatprep.subr.mxu0 0.0
        %1350 = vmatpush1.msra.mxu0 %v1102
        %1351 = vmatprep.subr.mxu0 0.0
        %1352 = vmatpush1.msra.mxu0 %v1103
        %1353 = vmatprep.subr.mxu0 0.0
        %1354 = vmatpush1.msra.mxu0 %v1104
        %1355 = vmatprep.subr.mxu0 0.0
        %1356 = vmatpush1.msra.mxu0 %v1105
        %1357 = vmatprep.subr.mxu0 0.0
        %1358 = vmatpush1.msra.mxu0 %v1106
        %1359 = vmatprep.subr.mxu0 0.0
        %1360 = vmatpush1.msra.mxu0 %v1107
        %1361 = vmatprep.subr.mxu0 0.0
        %1362 = vmatpush1.msra.mxu0 %v1108
        %1363 = vmatprep.subr.mxu0 0.0
        %1364 = vmatpush1.msra.mxu0 %v1109
        %1365 = vmatprep.subr.mxu0 0.0
        %1366 = vmatpush1.msra.mxu0 %v1110
        %1367 = vmatprep.subr.mxu0 0.0
        %1368 = vmatpush1.msra.mxu0 %v1111
        %1369 = vmatprep.subr.mxu0 0.0
        %1370 = vmatpush1.msra.mxu0 0.0
        %1371 = vmatprep.subr.mxu0 0.0
        %1372 = vmatpush1.msra.mxu0 0.0
        %1373 = vmatprep.subr.mxu0 0.0
        %1374 = vmatpush1.msra.mxu0 0.0
        %1375 = vmatprep.subr.mxu0 0.0
        %1376 = vmatpush1.msra.mxu0 0.0
        %1377 = vmatprep.subr.mxu0 0.0
        %1378 = vmatpush1.msra.mxu0 0.0
        %1379 = vmatprep.subr.mxu0 0.0
        %1380 = vmatpush1.msra.mxu0 0.0
        %1381 = vmatprep.subr.mxu0 0.0
        %1382 = vmatpush1.msra.mxu0 0.0
        %1383 = vmatprep.subr.mxu0 0.0
        %1384 = vmatpush1.msra.mxu0 0.0
        %1385 = vmatprep.subr.mxu0 0.0
        %1386 = vmatpush1.msra.mxu0 0.0
        %1387 = vmatprep.subr.mxu0 0.0
        %1388 = vmatpush1.msra.mxu0 0.0
        %1389 = vmatprep.subr.mxu0 0.0
        %1390 = vmatpush1.msra.mxu0 0.0
        %1391 = vmatprep.subr.mxu0 0.0
        %1392 = vmatpush1.msra.mxu0 0.0
        %1393 = vmatprep.subr.mxu0 0.0
        %1394 = vmatpush1.msra.mxu0 0.0
        %1395 = vmatprep.subr.mxu0 0.0
        %1396 = vmatpush1.msra.mxu0 0.0
        %1397 = vmatprep.subr.mxu0 0.0
        %1398 = vmatpush1.msra.mxu0 0.0
        %1399 = vmatprep.subr.mxu0 0.0
        %1400 = vmatpush1.msra.mxu0 0.0
        %1401 = vmatprep.mubr.f32.mxu0 0.0
        %1402 = vmatmul.mubr.f32.gmra.mrb[0].mxu0 %v1335
        %v1403 = vpop.f32.mrb[0].mxu0
        %v1404 = vadd.f32 0.0, %v1403
        %v1405 = vpop.f32.mrb[0].mxu0
        %1406 = vdwg.mxu0
        %v1439 = vlaneseq
        %v1440 = vshrl.u32 %v1439, 7
        %v1441 = vsub.s32 %v1145, %v1440
        %v1442 = vrot.slane %v856, %v1441
        %v1443 = vlaneseq
        %v1444 = vshrl.u32 %v1443, 7
        %v1445 = vsub.s32 %v1150, %v1444
        %v1446 = vrot.slane %v859, %v1445
        %v1447 = vsel %vm1155, %v1446, %v1442
        %v1448 = vlaneseq
        %v1449 = vshrl.u32 %v1448, 7
        %v1450 = vsub.s32 %v1157, %v1449
        %v1451 = vrot.slane %v862, %v1450
        %v1452 = vsel %vm1162, %v1451, %v1447
        %v1453 = vlaneseq
        %v1454 = vshrl.u32 %v1453, 7
        %v1455 = vsub.s32 %v1164, %v1454
        %v1456 = vrot.slane %v865, %v1455
        %v1457 = vsel %vm1169, %v1456, %v1452
        %v1458 = vlaneseq
        %v1459 = vshrl.u32 %v1458, 7
        %v1460 = vsub.s32 %v1171, %v1459
        %v1461 = vrot.slane %v868, %v1460
        %v1462 = vsel %vm1176, %v1461, %v1457
        %v1463 = vlaneseq
        %v1464 = vshrl.u32 %v1463, 7
        %v1465 = vsub.s32 %v1178, %v1464
        %v1466 = vrot.slane %v871, %v1465
        %v1467 = vsel %vm1183, %v1466, %v1462
        %v1468 = vlaneseq
        %v1469 = vshrl.u32 %v1468, 7
        %v1470 = vsub.s32 %v1185, %v1469
        %v1471 = vrot.slane %v874, %v1470
        %v1472 = vsel %vm1190, %v1471, %v1467
        %v1473 = vlaneseq
        %v1474 = vshrl.u32 %v1473, 7
        %v1475 = vsub.s32 %v1192, %v1474
        %v1476 = vrot.slane %v877, %v1475
        %v1477 = vsel %vm1197, %v1476, %v1472
        %v1478 = vlaneseq
        %v1479 = vshrl.u32 %v1478, 7
        %v1480 = vsub.s32 %v1199, %v1479
        %v1481 = vrot.slane %v880, %v1480
        %v1482 = vsel %vm1204, %v1481, %v1477
        %v1483 = vlaneseq
        %v1484 = vshrl.u32 %v1483, 7
        %v1485 = vsub.s32 %v1206, %v1484
        %v1486 = vrot.slane %v883, %v1485
        %v1487 = vsel %vm1211, %v1486, %v1482
        %v1488 = vlaneseq
        %v1489 = vshrl.u32 %v1488, 7
        %v1490 = vsub.s32 %v1213, %v1489
        %v1491 = vrot.slane %v886, %v1490
        %v1492 = vsel %vm1218, %v1491, %v1487
        %v1493 = vlaneseq
        %v1494 = vshrl.u32 %v1493, 7
        %v1495 = vsub.s32 %v1220, %v1494
        %v1496 = vrot.slane %v889, %v1495
        %v1497 = vsel %vm1225, %v1496, %v1492
        %v1498 = vlaneseq
        %v1499 = vshrl.u32 %v1498, 7
        %v1500 = vsub.s32 %v1227, %v1499
        %v1501 = vrot.slane %v892, %v1500
        %v1502 = vsel %vm1232, %v1501, %v1497
        %v1503 = vlaneseq
        %v1504 = vshrl.u32 %v1503, 7
        %v1505 = vsub.s32 %v1234, %v1504
        %v1506 = vrot.slane %v895, %v1505
        %v1507 = vsel %vm1239, %v1506, %v1502
        %v1508 = vlaneseq
        %v1509 = vshrl.u32 %v1508, 7
        %v1510 = vsub.s32 %v1241, %v1509
        %v1511 = vrot.slane %v898, %v1510
        %v1512 = vsel %vm1246, %v1511, %v1507
        %v1513 = vlaneseq
        %v1514 = vshrl.u32 %v1513, 7
        %v1515 = vsub.s32 %v1248, %v1514
        %v1516 = vrot.slane %v901, %v1515
        %v1517 = vsel %vm1253, %v1516, %v1512
        %v1518 = vlaneseq
        %v1519 = vshrl.u32 %v1518, 7
        %v1520 = vsub.s32 %v1145, %v1519
        %v1521 = vrot.slane %v904, %v1520
        %v1522 = vlaneseq
        %v1523 = vshrl.u32 %v1522, 7
        %v1524 = vsub.s32 %v1150, %v1523
        %v1525 = vrot.slane %v907, %v1524
        %v1526 = vsel %vm1155, %v1525, %v1521
        %v1527 = vlaneseq
        %v1528 = vshrl.u32 %v1527, 7
        %v1529 = vsub.s32 %v1157, %v1528
        %v1530 = vrot.slane %v910, %v1529
        %v1531 = vsel %vm1162, %v1530, %v1526
        %v1532 = vlaneseq
        %v1533 = vshrl.u32 %v1532, 7
        %v1534 = vsub.s32 %v1164, %v1533
        %v1535 = vrot.slane %v913, %v1534
        %v1536 = vsel %vm1169, %v1535, %v1531
        %v1537 = vlaneseq
        %v1538 = vshrl.u32 %v1537, 7
        %v1539 = vsub.s32 %v1171, %v1538
        %v1540 = vrot.slane %v916, %v1539
        %v1541 = vsel %vm1176, %v1540, %v1536
        %v1542 = vlaneseq
        %v1543 = vshrl.u32 %v1542, 7
        %v1544 = vsub.s32 %v1178, %v1543
        %v1545 = vrot.slane %v919, %v1544
        %v1546 = vsel %vm1183, %v1545, %v1541
        %v1547 = vlaneseq
        %v1548 = vshrl.u32 %v1547, 7
        %v1549 = vsub.s32 %v1185, %v1548
        %v1550 = vrot.slane %v922, %v1549
        %v1551 = vsel %vm1190, %v1550, %v1546
        %v1552 = vlaneseq
        %v1553 = vshrl.u32 %v1552, 7
        %v1554 = vsub.s32 %v1192, %v1553
        %v1555 = vrot.slane %v925, %v1554
        %v1556 = vsel %vm1197, %v1555, %v1551
        %v1557 = vlaneseq
        %v1558 = vshrl.u32 %v1557, 7
        %v1559 = vsub.s32 %v1199, %v1558
        %v1560 = vrot.slane %v928, %v1559
        %v1561 = vsel %vm1204, %v1560, %v1556
        %v1562 = vlaneseq
        %v1563 = vshrl.u32 %v1562, 7
        %v1564 = vsub.s32 %v1206, %v1563
        %v1565 = vrot.slane %v931, %v1564
        %v1566 = vsel %vm1211, %v1565, %v1561
        %v1567 = vlaneseq
        %v1568 = vshrl.u32 %v1567, 7
        %v1569 = vsub.s32 %v1213, %v1568
        %v1570 = vrot.slane %v934, %v1569
        %v1571 = vsel %vm1218, %v1570, %v1566
        %v1572 = vlaneseq
        %v1573 = vshrl.u32 %v1572, 7
        %v1574 = vsub.s32 %v1220, %v1573
        %v1575 = vrot.slane %v937, %v1574
        %v1576 = vsel %vm1225, %v1575, %v1571
        %v1577 = vlaneseq
        %v1578 = vshrl.u32 %v1577, 7
        %v1579 = vsub.s32 %v1227, %v1578
        %v1580 = vrot.slane %v940, %v1579
        %v1581 = vsel %vm1232, %v1580, %v1576
        %v1582 = vlaneseq
        %v1583 = vshrl.u32 %v1582, 7
        %v1584 = vsub.s32 %v1234, %v1583
        %v1585 = vrot.slane %v943, %v1584
        %v1586 = vsel %vm1239, %v1585, %v1581
        %v1587 = vlaneseq
        %v1588 = vshrl.u32 %v1587, 7
        %v1589 = vsub.s32 %v1241, %v1588
        %v1590 = vrot.slane %v946, %v1589
        %v1591 = vsel %vm1246, %v1590, %v1586
        %v1592 = vlaneseq
        %v1593 = vshrl.u32 %v1592, 7
        %v1594 = vsub.s32 %v1248, %v1593
        %v1595 = vrot.slane %v949, %v1594
        %v1596 = vsel %vm1253, %v1595, %v1591
        %v1597 = vsel %vm1334, %v1596, %v1517
        %1599 = vmatprep.subr.mxu0 0.0
        %1600 = vmatpush1.msra.mxu0 %v950
        %1601 = vmatprep.subr.mxu0 0.0
        %1602 = vmatpush1.msra.mxu0 %v951
        %1603 = vmatprep.subr.mxu0 0.0
        %1604 = vmatpush1.msra.mxu0 %v952
        %1605 = vmatprep.subr.mxu0 0.0
        %1606 = vmatpush1.msra.mxu0 %v953
        %1607 = vmatprep.subr.mxu0 0.0
        %1608 = vmatpush1.msra.mxu0 %v954
        %1609 = vmatprep.subr.mxu0 0.0
        %1610 = vmatpush1.msra.mxu0 %v955
        %1611 = vmatprep.subr.mxu0 0.0
        %1612 = vmatpush1.msra.mxu0 %v956
        %1613 = vmatprep.subr.mxu0 0.0
        %1614 = vmatpush1.msra.mxu0 %v957
        %1615 = vmatprep.subr.mxu0 0.0
        %1616 = vmatpush1.msra.mxu0 %v958
        %1617 = vmatprep.subr.mxu0 0.0
        %1618 = vmatpush1.msra.mxu0 %v959
        %1619 = vmatprep.subr.mxu0 0.0
        %1620 = vmatpush1.msra.mxu0 %v960
        %1621 = vmatprep.subr.mxu0 0.0
        %1622 = vmatpush1.msra.mxu0 %v961
        %1623 = vmatprep.subr.mxu0 0.0
        %1624 = vmatpush1.msra.mxu0 %v962
        %1625 = vmatprep.subr.mxu0 0.0
        %1626 = vmatpush1.msra.mxu0 %v963
        %1627 = vmatprep.subr.mxu0 0.0
        %1628 = vmatpush1.msra.mxu0 %v964
        %1629 = vmatprep.subr.mxu0 0.0
        %1630 = vmatpush1.msra.mxu0 %v965
        %1631 = vmatprep.subr.mxu0 0.0
        %1632 = vmatpush1.msra.mxu0 0.0
        %1633 = vmatprep.subr.mxu0 0.0
        %1634 = vmatpush1.msra.mxu0 0.0
        %1635 = vmatprep.subr.mxu0 0.0
        %1636 = vmatpush1.msra.mxu0 0.0
        %1637 = vmatprep.subr.mxu0 0.0
        %1638 = vmatpush1.msra.mxu0 0.0
        %1639 = vmatprep.subr.mxu0 0.0
        %1640 = vmatpush1.msra.mxu0 0.0
        %1641 = vmatprep.subr.mxu0 0.0
        %1642 = vmatpush1.msra.mxu0 0.0
        %1643 = vmatprep.subr.mxu0 0.0
        %1644 = vmatpush1.msra.mxu0 0.0
        %1645 = vmatprep.subr.mxu0 0.0
        %1646 = vmatpush1.msra.mxu0 0.0
        %1647 = vmatprep.subr.mxu0 0.0
        %1648 = vmatpush1.msra.mxu0 0.0
        %1649 = vmatprep.subr.mxu0 0.0
        %1650 = vmatpush1.msra.mxu0 0.0
        %1651 = vmatprep.subr.mxu0 0.0
        %1652 = vmatpush1.msra.mxu0 0.0
        %1653 = vmatprep.subr.mxu0 0.0
        %1654 = vmatpush1.msra.mxu0 0.0
        %1655 = vmatprep.subr.mxu0 0.0
        %1656 = vmatpush1.msra.mxu0 0.0
        %1657 = vmatprep.subr.mxu0 0.0
        %1658 = vmatpush1.msra.mxu0 0.0
        %1659 = vmatprep.subr.mxu0 0.0
        %1660 = vmatpush1.msra.mxu0 0.0
        %1661 = vmatprep.subr.mxu0 0.0
        %1662 = vmatpush1.msra.mxu0 0.0
        %1663 = vmatprep.mubr.f32.mxu0 0.0
        %1664 = vmatmul.mubr.f32.gmra.mrb[0].mxu0 %v1597
        %v1665 = vpop.f32.mrb[0].mxu0
        %v1666 = vadd.f32 %v1404, %v1665
        %v1667 = vpop.f32.mrb[0].mxu0
        %1668 = vdwg.mxu0
        %s1669 = scalar_lea.vmem %s776, 256 [#allocation3]
        %v1670 = vld [vmem:[%s1669] sm:$0xff]
        %v1671 = vld [vmem:[%s1669 + $0x8] sm:$0xff]
        %v1672 = vld [vmem:[%s1669 + $0x10] sm:$0xff]
        %v1673 = vld [vmem:[%s1669 + $0x18] sm:$0xff]
        %v1674 = vld [vmem:[%s1669 + $0x20] sm:$0xff]
        %v1675 = vld [vmem:[%s1669 + $0x28] sm:$0xff]
        %v1676 = vld [vmem:[%s1669 + $0x30] sm:$0xff]
        %v1677 = vld [vmem:[%s1669 + $0x38] sm:$0xff]
        %v1678 = vld [vmem:[%s1669 + $0x40] sm:$0xff]
        %v1679 = vld [vmem:[%s1669 + $0x48] sm:$0xff]
        %v1680 = vld [vmem:[%s1669 + $0x50] sm:$0xff]
        %v1681 = vld [vmem:[%s1669 + $0x58] sm:$0xff]
        %v1682 = vld [vmem:[%s1669 + $0x60] sm:$0xff]
        %v1683 = vld [vmem:[%s1669 + $0x68] sm:$0xff]
        %v1684 = vld [vmem:[%s1669 + $0x70] sm:$0xff]
        %v1685 = vld [vmem:[%s1669 + $0x78] sm:$0xff]
        %v1686 = vld [vmem:[%s1669 + $0x200] sm:$0xff]
        %v1687 = vld [vmem:[%s1669 + $0x208] sm:$0xff]
        %v1688 = vld [vmem:[%s1669 + $0x210] sm:$0xff]
        %v1689 = vld [vmem:[%s1669 + $0x218] sm:$0xff]
        %v1690 = vld [vmem:[%s1669 + $0x220] sm:$0xff]
        %v1691 = vld [vmem:[%s1669 + $0x228] sm:$0xff]
        %v1692 = vld [vmem:[%s1669 + $0x230] sm:$0xff]
        %v1693 = vld [vmem:[%s1669 + $0x238] sm:$0xff]
        %v1694 = vld [vmem:[%s1669 + $0x240] sm:$0xff]
        %v1695 = vld [vmem:[%s1669 + $0x248] sm:$0xff]
        %v1696 = vld [vmem:[%s1669 + $0x250] sm:$0xff]
        %v1697 = vld [vmem:[%s1669 + $0x258] sm:$0xff]
        %v1698 = vld [vmem:[%s1669 + $0x260] sm:$0xff]
        %v1699 = vld [vmem:[%s1669 + $0x268] sm:$0xff]
        %v1700 = vld [vmem:[%s1669 + $0x270] sm:$0xff]
        %v1701 = vld [vmem:[%s1669 + $0x278] sm:$0xff]
        %v1702 = vsel %vm853, %v1670, -inf
        %1703 = vmax.xlane.f32.xlu0 %v1702
        %v1704 = vpop.xlane.xlu0 %1703
        %v1705 = vsel %vm853, %v1671, -inf
        %1706 = vmax.xlane.f32.xlu0 %v1705
        %v1707 = vpop.xlane.xlu0 %1706
        %v1708 = vsel %vm853, %v1672, -inf
        %1709 = vmax.xlane.f32.xlu0 %v1708
        %v1710 = vpop.xlane.xlu0 %1709
        %v1711 = vsel %vm853, %v1673, -inf
        %1712 = vmax.xlane.f32.xlu0 %v1711
        %v1713 = vpop.xlane.xlu0 %1712
        %v1714 = vsel %vm853, %v1674, -inf
        %1715 = vmax.xlane.f32.xlu0 %v1714
        %v1716 = vpop.xlane.xlu0 %1715
        %v1717 = vsel %vm853, %v1675, -inf
        %1718 = vmax.xlane.f32.xlu0 %v1717
        %v1719 = vpop.xlane.xlu0 %1718
        %v1720 = vsel %vm853, %v1676, -inf
        %1721 = vmax.xlane.f32.xlu0 %v1720
        %v1722 = vpop.xlane.xlu0 %1721
        %v1723 = vsel %vm853, %v1677, -inf
        %1724 = vmax.xlane.f32.xlu0 %v1723
        %v1725 = vpop.xlane.xlu0 %1724
        %v1726 = vsel %vm853, %v1678, -inf
        %1727 = vmax.xlane.f32.xlu0 %v1726
        %v1728 = vpop.xlane.xlu0 %1727
        %v1729 = vsel %vm853, %v1679, -inf
        %1730 = vmax.xlane.f32.xlu0 %v1729
        %v1731 = vpop.xlane.xlu0 %1730
        %v1732 = vsel %vm853, %v1680, -inf
        %1733 = vmax.xlane.f32.xlu0 %v1732
        %v1734 = vpop.xlane.xlu0 %1733
        %v1735 = vsel %vm853, %v1681, -inf
        %1736 = vmax.xlane.f32.xlu0 %v1735
        %v1737 = vpop.xlane.xlu0 %1736
        %v1738 = vsel %vm853, %v1682, -inf
        %1739 = vmax.xlane.f32.xlu0 %v1738
        %v1740 = vpop.xlane.xlu0 %1739
        %v1741 = vsel %vm853, %v1683, -inf
        %1742 = vmax.xlane.f32.xlu0 %v1741
        %v1743 = vpop.xlane.xlu0 %1742
        %v1744 = vsel %vm853, %v1684, -inf
        %1745 = vmax.xlane.f32.xlu0 %v1744
        %v1746 = vpop.xlane.xlu0 %1745
        %v1747 = vsel %vm853, %v1685, -inf
        %1748 = vmax.xlane.f32.xlu0 %v1747
        %v1749 = vpop.xlane.xlu0 %1748
        %v1750 = vsel %vm853, %v1686, -inf
        %1751 = vmax.xlane.f32.xlu0 %v1750
        %v1752 = vpop.xlane.xlu0 %1751
        %v1753 = vsel %vm853, %v1687, -inf
        %1754 = vmax.xlane.f32.xlu0 %v1753
        %v1755 = vpop.xlane.xlu0 %1754
        %v1756 = vsel %vm853, %v1688, -inf
        %1757 = vmax.xlane.f32.xlu0 %v1756
        %v1758 = vpop.xlane.xlu0 %1757
        %v1759 = vsel %vm853, %v1689, -inf
        %1760 = vmax.xlane.f32.xlu0 %v1759
        %v1761 = vpop.xlane.xlu0 %1760
        %v1762 = vsel %vm853, %v1690, -inf
        %1763 = vmax.xlane.f32.xlu0 %v1762
        %v1764 = vpop.xlane.xlu0 %1763
        %v1765 = vsel %vm853, %v1691, -inf
        %1766 = vmax.xlane.f32.xlu0 %v1765
        %v1767 = vpop.xlane.xlu0 %1766
        %v1768 = vsel %vm853, %v1692, -inf
        %1769 = vmax.xlane.f32.xlu0 %v1768
        %v1770 = vpop.xlane.xlu0 %1769
        %v1771 = vsel %vm853, %v1693, -inf
        %1772 = vmax.xlane.f32.xlu0 %v1771
        %v1773 = vpop.xlane.xlu0 %1772
        %v1774 = vsel %vm853, %v1694, -inf
        %1775 = vmax.xlane.f32.xlu0 %v1774
        %v1776 = vpop.xlane.xlu0 %1775
        %v1777 = vsel %vm853, %v1695, -inf
        %1778 = vmax.xlane.f32.xlu0 %v1777
        %v1779 = vpop.xlane.xlu0 %1778
        %v1780 = vsel %vm853, %v1696, -inf
        %1781 = vmax.xlane.f32.xlu0 %v1780
        %v1782 = vpop.xlane.xlu0 %1781
        %v1783 = vsel %vm853, %v1697, -inf
        %1784 = vmax.xlane.f32.xlu0 %v1783
        %v1785 = vpop.xlane.xlu0 %1784
        %v1786 = vsel %vm853, %v1698, -inf
        %1787 = vmax.xlane.f32.xlu0 %v1786
        %v1788 = vpop.xlane.xlu0 %1787
        %v1789 = vsel %vm853, %v1699, -inf
        %1790 = vmax.xlane.f32.xlu0 %v1789
        %v1791 = vpop.xlane.xlu0 %1790
        %v1792 = vsel %vm853, %v1700, -inf
        %1793 = vmax.xlane.f32.xlu0 %v1792
        %v1794 = vpop.xlane.xlu0 %1793
        %v1795 = vsel %vm853, %v1701, -inf
        %1796 = vmax.xlane.f32.xlu0 %v1795
        %v1797 = vpop.xlane.xlu0 %1796
        %s1798 = scalar_lea.vmem %s812, 256
        %v1799 = vld [vmem:[%s1798] sm:$0xff]
        %v1800 = vld [vmem:[%s1798 + $0x8] sm:$0xff]
        %v1801 = vld [vmem:[%s1798 + $0x10] sm:$0xff]
        %v1802 = vld [vmem:[%s1798 + $0x18] sm:$0xff]
        %v1803 = vld [vmem:[%s1798 + $0x20] sm:$0xff]
        %v1804 = vld [vmem:[%s1798 + $0x28] sm:$0xff]
        %v1805 = vld [vmem:[%s1798 + $0x30] sm:$0xff]
        %v1806 = vld [vmem:[%s1798 + $0x38] sm:$0xff]
        %v1807 = vld [vmem:[%s1798 + $0x40] sm:$0xff]
        %v1808 = vld [vmem:[%s1798 + $0x48] sm:$0xff]
        %v1809 = vld [vmem:[%s1798 + $0x50] sm:$0xff]
        %v1810 = vld [vmem:[%s1798 + $0x58] sm:$0xff]
        %v1811 = vld [vmem:[%s1798 + $0x60] sm:$0xff]
        %v1812 = vld [vmem:[%s1798 + $0x68] sm:$0xff]
        %v1813 = vld [vmem:[%s1798 + $0x70] sm:$0xff]
        %v1814 = vld [vmem:[%s1798 + $0x78] sm:$0xff]
        %v1847 = vlaneseq
        %v1848 = vshrl.u32 %v1847, 7
        %v1849 = vsub.s32 %v1145, %v1848
        %v1850 = vrot.slane %v1704, %v1849
        %v1851 = vlaneseq
        %v1852 = vshrl.u32 %v1851, 7
        %v1853 = vsub.s32 %v1150, %v1852
        %v1854 = vrot.slane %v1707, %v1853
        %v1855 = vsel %vm1155, %v1854, %v1850
        %v1856 = vlaneseq
        %v1857 = vshrl.u32 %v1856, 7
        %v1858 = vsub.s32 %v1157, %v1857
        %v1859 = vrot.slane %v1710, %v1858
        %v1860 = vsel %vm1162, %v1859, %v1855
        %v1861 = vlaneseq
        %v1862 = vshrl.u32 %v1861, 7
        %v1863 = vsub.s32 %v1164, %v1862
        %v1864 = vrot.slane %v1713, %v1863
        %v1865 = vsel %vm1169, %v1864, %v1860
        %v1866 = vlaneseq
        %v1867 = vshrl.u32 %v1866, 7
        %v1868 = vsub.s32 %v1171, %v1867
        %v1869 = vrot.slane %v1716, %v1868
        %v1870 = vsel %vm1176, %v1869, %v1865
        %v1871 = vlaneseq
        %v1872 = vshrl.u32 %v1871, 7
        %v1873 = vsub.s32 %v1178, %v1872
        %v1874 = vrot.slane %v1719, %v1873
        %v1875 = vsel %vm1183, %v1874, %v1870
        %v1876 = vlaneseq
        %v1877 = vshrl.u32 %v1876, 7
        %v1878 = vsub.s32 %v1185, %v1877
        %v1879 = vrot.slane %v1722, %v1878
        %v1880 = vsel %vm1190, %v1879, %v1875
        %v1881 = vlaneseq
        %v1882 = vshrl.u32 %v1881, 7
        %v1883 = vsub.s32 %v1192, %v1882
        %v1884 = vrot.slane %v1725, %v1883
        %v1885 = vsel %vm1197, %v1884, %v1880
        %v1886 = vlaneseq
        %v1887 = vshrl.u32 %v1886, 7
        %v1888 = vsub.s32 %v1199, %v1887
        %v1889 = vrot.slane %v1728, %v1888
        %v1890 = vsel %vm1204, %v1889, %v1885
        %v1891 = vlaneseq
        %v1892 = vshrl.u32 %v1891, 7
        %v1893 = vsub.s32 %v1206, %v1892
        %v1894 = vrot.slane %v1731, %v1893
        %v1895 = vsel %vm1211, %v1894, %v1890
        %v1896 = vlaneseq
        %v1897 = vshrl.u32 %v1896, 7
        %v1898 = vsub.s32 %v1213, %v1897
        %v1899 = vrot.slane %v1734, %v1898
        %v1900 = vsel %vm1218, %v1899, %v1895
        %v1901 = vlaneseq
        %v1902 = vshrl.u32 %v1901, 7
        %v1903 = vsub.s32 %v1220, %v1902
        %v1904 = vrot.slane %v1737, %v1903
        %v1905 = vsel %vm1225, %v1904, %v1900
        %v1906 = vlaneseq
        %v1907 = vshrl.u32 %v1906, 7
        %v1908 = vsub.s32 %v1227, %v1907
        %v1909 = vrot.slane %v1740, %v1908
        %v1910 = vsel %vm1232, %v1909, %v1905
        %v1911 = vlaneseq
        %v1912 = vshrl.u32 %v1911, 7
        %v1913 = vsub.s32 %v1234, %v1912
        %v1914 = vrot.slane %v1743, %v1913
        %v1915 = vsel %vm1239, %v1914, %v1910
        %v1916 = vlaneseq
        %v1917 = vshrl.u32 %v1916, 7
        %v1918 = vsub.s32 %v1241, %v1917
        %v1919 = vrot.slane %v1746, %v1918
        %v1920 = vsel %vm1246, %v1919, %v1915
        %v1921 = vlaneseq
        %v1922 = vshrl.u32 %v1921, 7
        %v1923 = vsub.s32 %v1248, %v1922
        %v1924 = vrot.slane %v1749, %v1923
        %v1925 = vsel %vm1253, %v1924, %v1920
        %v1926 = vlaneseq
        %v1927 = vshrl.u32 %v1926, 7
        %v1928 = vsub.s32 %v1145, %v1927
        %v1929 = vrot.slane %v1752, %v1928
        %v1930 = vlaneseq
        %v1931 = vshrl.u32 %v1930, 7
        %v1932 = vsub.s32 %v1150, %v1931
        %v1933 = vrot.slane %v1755, %v1932
        %v1934 = vsel %vm1155, %v1933, %v1929
        %v1935 = vlaneseq
        %v1936 = vshrl.u32 %v1935, 7
        %v1937 = vsub.s32 %v1157, %v1936
        %v1938 = vrot.slane %v1758, %v1937
        %v1939 = vsel %vm1162, %v1938, %v1934
        %v1940 = vlaneseq
        %v1941 = vshrl.u32 %v1940, 7
        %v1942 = vsub.s32 %v1164, %v1941
        %v1943 = vrot.slane %v1761, %v1942
        %v1944 = vsel %vm1169, %v1943, %v1939
        %v1945 = vlaneseq
        %v1946 = vshrl.u32 %v1945, 7
        %v1947 = vsub.s32 %v1171, %v1946
        %v1948 = vrot.slane %v1764, %v1947
        %v1949 = vsel %vm1176, %v1948, %v1944
        %v1950 = vlaneseq
        %v1951 = vshrl.u32 %v1950, 7
        %v1952 = vsub.s32 %v1178, %v1951
        %v1953 = vrot.slane %v1767, %v1952
        %v1954 = vsel %vm1183, %v1953, %v1949
        %v1955 = vlaneseq
        %v1956 = vshrl.u32 %v1955, 7
        %v1957 = vsub.s32 %v1185, %v1956
        %v1958 = vrot.slane %v1770, %v1957
        %v1959 = vsel %vm1190, %v1958, %v1954
        %v1960 = vlaneseq
        %v1961 = vshrl.u32 %v1960, 7
        %v1962 = vsub.s32 %v1192, %v1961
        %v1963 = vrot.slane %v1773, %v1962
        %v1964 = vsel %vm1197, %v1963, %v1959
        %v1965 = vlaneseq
        %v1966 = vshrl.u32 %v1965, 7
        %v1967 = vsub.s32 %v1199, %v1966
        %v1968 = vrot.slane %v1776, %v1967
        %v1969 = vsel %vm1204, %v1968, %v1964
        %v1970 = vlaneseq
        %v1971 = vshrl.u32 %v1970, 7
        %v1972 = vsub.s32 %v1206, %v1971
        %v1973 = vrot.slane %v1779, %v1972
        %v1974 = vsel %vm1211, %v1973, %v1969
        %v1975 = vlaneseq
        %v1976 = vshrl.u32 %v1975, 7
        %v1977 = vsub.s32 %v1213, %v1976
        %v1978 = vrot.slane %v1782, %v1977
        %v1979 = vsel %vm1218, %v1978, %v1974
        %v1980 = vlaneseq
        %v1981 = vshrl.u32 %v1980, 7
        %v1982 = vsub.s32 %v1220, %v1981
        %v1983 = vrot.slane %v1785, %v1982
        %v1984 = vsel %vm1225, %v1983, %v1979
        %v1985 = vlaneseq
        %v1986 = vshrl.u32 %v1985, 7
        %v1987 = vsub.s32 %v1227, %v1986
        %v1988 = vrot.slane %v1788, %v1987
        %v1989 = vsel %vm1232, %v1988, %v1984
        %v1990 = vlaneseq
        %v1991 = vshrl.u32 %v1990, 7
        %v1992 = vsub.s32 %v1234, %v1991
        %v1993 = vrot.slane %v1791, %v1992
        %v1994 = vsel %vm1239, %v1993, %v1989
        %v1995 = vlaneseq
        %v1996 = vshrl.u32 %v1995, 7
        %v1997 = vsub.s32 %v1241, %v1996
        %v1998 = vrot.slane %v1794, %v1997
        %v1999 = vsel %vm1246, %v1998, %v1994
        %v2000 = vlaneseq
        %v2001 = vshrl.u32 %v2000, 7
        %v2002 = vsub.s32 %v1248, %v2001
        %v2003 = vrot.slane %v1797, %v2002
        %v2004 = vsel %vm1253, %v2003, %v1999
        %v2005 = vsel %vm1334, %v2004, %v1925
        %2007 = vmatprep.subr.mxu0 0.0
        %2008 = vmatpush1.msra.mxu0 %v1799
        %2009 = vmatprep.subr.mxu0 0.0
        %2010 = vmatpush1.msra.mxu0 %v1800
        %2011 = vmatprep.subr.mxu0 0.0
        %2012 = vmatpush1.msra.mxu0 %v1801
        %2013 = vmatprep.subr.mxu0 0.0
        %2014 = vmatpush1.msra.mxu0 %v1802
        %2015 = vmatprep.subr.mxu0 0.0
        %2016 = vmatpush1.msra.mxu0 %v1803
        %2017 = vmatprep.subr.mxu0 0.0
        %2018 = vmatpush1.msra.mxu0 %v1804
        %2019 = vmatprep.subr.mxu0 0.0
        %2020 = vmatpush1.msra.mxu0 %v1805
        %2021 = vmatprep.subr.mxu0 0.0
        %2022 = vmatpush1.msra.mxu0 %v1806
        %2023 = vmatprep.subr.mxu0 0.0
        %2024 = vmatpush1.msra.mxu0 %v1807
        %2025 = vmatprep.subr.mxu0 0.0
        %2026 = vmatpush1.msra.mxu0 %v1808
        %2027 = vmatprep.subr.mxu0 0.0
        %2028 = vmatpush1.msra.mxu0 %v1809
        %2029 = vmatprep.subr.mxu0 0.0
        %2030 = vmatpush1.msra.mxu0 %v1810
        %2031 = vmatprep.subr.mxu0 0.0
        %2032 = vmatpush1.msra.mxu0 %v1811
        %2033 = vmatprep.subr.mxu0 0.0
        %2034 = vmatpush1.msra.mxu0 %v1812
        %2035 = vmatprep.subr.mxu0 0.0
        %2036 = vmatpush1.msra.mxu0 %v1813
        %2037 = vmatprep.subr.mxu0 0.0
        %2038 = vmatpush1.msra.mxu0 %v1814
        %2039 = vmatprep.subr.mxu0 0.0
        %2040 = vmatpush1.msra.mxu0 0.0
        %2041 = vmatprep.subr.mxu0 0.0
        %2042 = vmatpush1.msra.mxu0 0.0
        %2043 = vmatprep.subr.mxu0 0.0
        %2044 = vmatpush1.msra.mxu0 0.0
        %2045 = vmatprep.subr.mxu0 0.0
        %2046 = vmatpush1.msra.mxu0 0.0
        %2047 = vmatprep.subr.mxu0 0.0
        %2048 = vmatpush1.msra.mxu0 0.0
        %2049 = vmatprep.subr.mxu0 0.0
        %2050 = vmatpush1.msra.mxu0 0.0
        %2051 = vmatprep.subr.mxu0 0.0
        %2052 = vmatpush1.msra.mxu0 0.0
        %2053 = vmatprep.subr.mxu0 0.0
        %2054 = vmatpush1.msra.mxu0 0.0
        %2055 = vmatprep.subr.mxu0 0.0
        %2056 = vmatpush1.msra.mxu0 0.0
        %2057 = vmatprep.subr.mxu0 0.0
        %2058 = vmatpush1.msra.mxu0 0.0
        %2059 = vmatprep.subr.mxu0 0.0
        %2060 = vmatpush1.msra.mxu0 0.0
        %2061 = vmatprep.subr.mxu0 0.0
        %2062 = vmatpush1.msra.mxu0 0.0
        %2063 = vmatprep.subr.mxu0 0.0
        %2064 = vmatpush1.msra.mxu0 0.0
        %2065 = vmatprep.subr.mxu0 0.0
        %2066 = vmatpush1.msra.mxu0 0.0
        %2067 = vmatprep.subr.mxu0 0.0
        %2068 = vmatpush1.msra.mxu0 0.0
        %2069 = vmatprep.subr.mxu0 0.0
        %2070 = vmatpush1.msra.mxu0 0.0
        %2071 = vmatprep.mubr.f32.mxu0 0.0
        %2072 = vmatmul.mubr.f32.gmra.mrb[0].mxu0 %v2005
        %v2073 = vpop.f32.mrb[0].mxu0
        %v2074 = vadd.f32 0.0, %v2073
        %v2075 = vpop.f32.mrb[0].mxu0
        %2076 = vdwg.mxu0
        %v2077 = vadd.f32 %v1666, %v2074
        %s2078 = scalar_lea.vmem %s776, 384 [#allocation3]
        %v2079 = vld [vmem:[%s2078] sm:$0xff]
        %v2080 = vld [vmem:[%s2078 + $0x8] sm:$0xff]
        %v2081 = vld [vmem:[%s2078 + $0x10] sm:$0xff]
        %v2082 = vld [vmem:[%s2078 + $0x18] sm:$0xff]
        %v2083 = vld [vmem:[%s2078 + $0x20] sm:$0xff]
        %v2084 = vld [vmem:[%s2078 + $0x28] sm:$0xff]
        %v2085 = vld [vmem:[%s2078 + $0x30] sm:$0xff]
        %v2086 = vld [vmem:[%s2078 + $0x38] sm:$0xff]
        %v2087 = vld [vmem:[%s2078 + $0x40] sm:$0xff]
        %v2088 = vld [vmem:[%s2078 + $0x48] sm:$0xff]
        %v2089 = vld [vmem:[%s2078 + $0x50] sm:$0xff]
        %v2090 = vld [vmem:[%s2078 + $0x58] sm:$0xff]
        %v2091 = vld [vmem:[%s2078 + $0x60] sm:$0xff]
        %v2092 = vld [vmem:[%s2078 + $0x68] sm:$0xff]
        %v2093 = vld [vmem:[%s2078 + $0x70] sm:$0xff]
        %v2094 = vld [vmem:[%s2078 + $0x78] sm:$0xff]
        %v2095 = vld [vmem:[%s2078 + $0x200] sm:$0xff]
        %v2096 = vld [vmem:[%s2078 + $0x208] sm:$0xff]
        %v2097 = vld [vmem:[%s2078 + $0x210] sm:$0xff]
        %v2098 = vld [vmem:[%s2078 + $0x218] sm:$0xff]
        %v2099 = vld [vmem:[%s2078 + $0x220] sm:$0xff]
        %v2100 = vld [vmem:[%s2078 + $0x228] sm:$0xff]
        %v2101 = vld [vmem:[%s2078 + $0x230] sm:$0xff]
        %v2102 = vld [vmem:[%s2078 + $0x238] sm:$0xff]
        %v2103 = vld [vmem:[%s2078 + $0x240] sm:$0xff]
        %v2104 = vld [vmem:[%s2078 + $0x248] sm:$0xff]
        %v2105 = vld [vmem:[%s2078 + $0x250] sm:$0xff]
        %v2106 = vld [vmem:[%s2078 + $0x258] sm:$0xff]
        %v2107 = vld [vmem:[%s2078 + $0x260] sm:$0xff]
        %v2108 = vld [vmem:[%s2078 + $0x268] sm:$0xff]
        %v2109 = vld [vmem:[%s2078 + $0x270] sm:$0xff]
        %v2110 = vld [vmem:[%s2078 + $0x278] sm:$0xff]
        %v2111 = vsel %vm853, %v2079, -inf
        %2112 = vmax.xlane.f32.xlu0 %v2111
        %v2113 = vpop.xlane.xlu0 %2112
        %v2114 = vsel %vm853, %v2080, -inf
        %2115 = vmax.xlane.f32.xlu0 %v2114
        %v2116 = vpop.xlane.xlu0 %2115
        %v2117 = vsel %vm853, %v2081, -inf
        %2118 = vmax.xlane.f32.xlu0 %v2117
        %v2119 = vpop.xlane.xlu0 %2118
        %v2120 = vsel %vm853, %v2082, -inf
        %2121 = vmax.xlane.f32.xlu0 %v2120
        %v2122 = vpop.xlane.xlu0 %2121
        %v2123 = vsel %vm853, %v2083, -inf
        %2124 = vmax.xlane.f32.xlu0 %v2123
        %v2125 = vpop.xlane.xlu0 %2124
        %v2126 = vsel %vm853, %v2084, -inf
        %2127 = vmax.xlane.f32.xlu0 %v2126
        %v2128 = vpop.xlane.xlu0 %2127
        %v2129 = vsel %vm853, %v2085, -inf
        %2130 = vmax.xlane.f32.xlu0 %v2129
        %v2131 = vpop.xlane.xlu0 %2130
        %v2132 = vsel %vm853, %v2086, -inf
        %2133 = vmax.xlane.f32.xlu0 %v2132
        %v2134 = vpop.xlane.xlu0 %2133
        %v2135 = vsel %vm853, %v2087, -inf
        %2136 = vmax.xlane.f32.xlu0 %v2135
        %v2137 = vpop.xlane.xlu0 %2136
        %v2138 = vsel %vm853, %v2088, -inf
        %2139 = vmax.xlane.f32.xlu0 %v2138
        %v2140 = vpop.xlane.xlu0 %2139
        %v2141 = vsel %vm853, %v2089, -inf
        %2142 = vmax.xlane.f32.xlu0 %v2141
        %v2143 = vpop.xlane.xlu0 %2142
        %v2144 = vsel %vm853, %v2090, -inf
        %2145 = vmax.xlane.f32.xlu0 %v2144
        %v2146 = vpop.xlane.xlu0 %2145
        %v2147 = vsel %vm853, %v2091, -inf
        %2148 = vmax.xlane.f32.xlu0 %v2147
        %v2149 = vpop.xlane.xlu0 %2148
        %v2150 = vsel %vm853, %v2092, -inf
        %2151 = vmax.xlane.f32.xlu0 %v2150
        %v2152 = vpop.xlane.xlu0 %2151
        %v2153 = vsel %vm853, %v2093, -inf
        %2154 = vmax.xlane.f32.xlu0 %v2153
        %v2155 = vpop.xlane.xlu0 %2154
        %v2156 = vsel %vm853, %v2094, -inf
        %2157 = vmax.xlane.f32.xlu0 %v2156
        %v2158 = vpop.xlane.xlu0 %2157
        %v2159 = vsel %vm853, %v2095, -inf
        %2160 = vmax.xlane.f32.xlu0 %v2159
        %v2161 = vpop.xlane.xlu0 %2160
        %v2162 = vsel %vm853, %v2096, -inf
        %2163 = vmax.xlane.f32.xlu0 %v2162
        %v2164 = vpop.xlane.xlu0 %2163
        %v2165 = vsel %vm853, %v2097, -inf
        %2166 = vmax.xlane.f32.xlu0 %v2165
        %v2167 = vpop.xlane.xlu0 %2166
        %v2168 = vsel %vm853, %v2098, -inf
        %2169 = vmax.xlane.f32.xlu0 %v2168
        %v2170 = vpop.xlane.xlu0 %2169
        %v2171 = vsel %vm853, %v2099, -inf
        %2172 = vmax.xlane.f32.xlu0 %v2171
        %v2173 = vpop.xlane.xlu0 %2172
        %v2174 = vsel %vm853, %v2100, -inf
        %2175 = vmax.xlane.f32.xlu0 %v2174
        %v2176 = vpop.xlane.xlu0 %2175
        %v2177 = vsel %vm853, %v2101, -inf
        %2178 = vmax.xlane.f32.xlu0 %v2177
        %v2179 = vpop.xlane.xlu0 %2178
        %v2180 = vsel %vm853, %v2102, -inf
        %2181 = vmax.xlane.f32.xlu0 %v2180
        %v2182 = vpop.xlane.xlu0 %2181
        %v2183 = vsel %vm853, %v2103, -inf
        %2184 = vmax.xlane.f32.xlu0 %v2183
        %v2185 = vpop.xlane.xlu0 %2184
        %v2186 = vsel %vm853, %v2104, -inf
        %2187 = vmax.xlane.f32.xlu0 %v2186
        %v2188 = vpop.xlane.xlu0 %2187
        %v2189 = vsel %vm853, %v2105, -inf
        %2190 = vmax.xlane.f32.xlu0 %v2189
        %v2191 = vpop.xlane.xlu0 %2190
        %v2192 = vsel %vm853, %v2106, -inf
        %2193 = vmax.xlane.f32.xlu0 %v2192
        %v2194 = vpop.xlane.xlu0 %2193
        %v2195 = vsel %vm853, %v2107, -inf
        %2196 = vmax.xlane.f32.xlu0 %v2195
        %v2197 = vpop.xlane.xlu0 %2196
        %v2198 = vsel %vm853, %v2108, -inf
        %2199 = vmax.xlane.f32.xlu0 %v2198
        %v2200 = vpop.xlane.xlu0 %2199
        %v2201 = vsel %vm853, %v2109, -inf
        %2202 = vmax.xlane.f32.xlu0 %v2201
        %v2203 = vpop.xlane.xlu0 %2202
        %v2204 = vsel %vm853, %v2110, -inf
        %2205 = vmax.xlane.f32.xlu0 %v2204
        %v2206 = vpop.xlane.xlu0 %2205
        %s2207 = scalar_lea.vmem %s812, 384
        %v2208 = vld [vmem:[%s2207] sm:$0xff]
        %v2209 = vld [vmem:[%s2207 + $0x8] sm:$0xff]
        %v2210 = vld [vmem:[%s2207 + $0x10] sm:$0xff]
        %v2211 = vld [vmem:[%s2207 + $0x18] sm:$0xff]
        %v2212 = vld [vmem:[%s2207 + $0x20] sm:$0xff]
        %v2213 = vld [vmem:[%s2207 + $0x28] sm:$0xff]
        %v2214 = vld [vmem:[%s2207 + $0x30] sm:$0xff]
        %v2215 = vld [vmem:[%s2207 + $0x38] sm:$0xff]
        %v2216 = vld [vmem:[%s2207 + $0x40] sm:$0xff]
        %v2217 = vld [vmem:[%s2207 + $0x48] sm:$0xff]
        %v2218 = vld [vmem:[%s2207 + $0x50] sm:$0xff]
        %v2219 = vld [vmem:[%s2207 + $0x58] sm:$0xff]
        %v2220 = vld [vmem:[%s2207 + $0x60] sm:$0xff]
        %v2221 = vld [vmem:[%s2207 + $0x68] sm:$0xff]
        %v2222 = vld [vmem:[%s2207 + $0x70] sm:$0xff]
        %v2223 = vld [vmem:[%s2207 + $0x78] sm:$0xff]
        %v2256 = vlaneseq
        %v2257 = vshrl.u32 %v2256, 7
        %v2258 = vsub.s32 %v1145, %v2257
        %v2259 = vrot.slane %v2113, %v2258
        %v2260 = vlaneseq
        %v2261 = vshrl.u32 %v2260, 7
        %v2262 = vsub.s32 %v1150, %v2261
        %v2263 = vrot.slane %v2116, %v2262
        %v2264 = vsel %vm1155, %v2263, %v2259
        %v2265 = vlaneseq
        %v2266 = vshrl.u32 %v2265, 7
        %v2267 = vsub.s32 %v1157, %v2266
        %v2268 = vrot.slane %v2119, %v2267
        %v2269 = vsel %vm1162, %v2268, %v2264
        %v2270 = vlaneseq
        %v2271 = vshrl.u32 %v2270, 7
        %v2272 = vsub.s32 %v1164, %v2271
        %v2273 = vrot.slane %v2122, %v2272
        %v2274 = vsel %vm1169, %v2273, %v2269
        %v2275 = vlaneseq
        %v2276 = vshrl.u32 %v2275, 7
        %v2277 = vsub.s32 %v1171, %v2276
        %v2278 = vrot.slane %v2125, %v2277
        %v2279 = vsel %vm1176, %v2278, %v2274
        %v2280 = vlaneseq
        %v2281 = vshrl.u32 %v2280, 7
        %v2282 = vsub.s32 %v1178, %v2281
        %v2283 = vrot.slane %v2128, %v2282
        %v2284 = vsel %vm1183, %v2283, %v2279
        %v2285 = vlaneseq
        %v2286 = vshrl.u32 %v2285, 7
        %v2287 = vsub.s32 %v1185, %v2286
        %v2288 = vrot.slane %v2131, %v2287
        %v2289 = vsel %vm1190, %v2288, %v2284
        %v2290 = vlaneseq
        %v2291 = vshrl.u32 %v2290, 7
        %v2292 = vsub.s32 %v1192, %v2291
        %v2293 = vrot.slane %v2134, %v2292
        %v2294 = vsel %vm1197, %v2293, %v2289
        %v2295 = vlaneseq
        %v2296 = vshrl.u32 %v2295, 7
        %v2297 = vsub.s32 %v1199, %v2296
        %v2298 = vrot.slane %v2137, %v2297
        %v2299 = vsel %vm1204, %v2298, %v2294
        %v2300 = vlaneseq
        %v2301 = vshrl.u32 %v2300, 7
        %v2302 = vsub.s32 %v1206, %v2301
        %v2303 = vrot.slane %v2140, %v2302
        %v2304 = vsel %vm1211, %v2303, %v2299
        %v2305 = vlaneseq
        %v2306 = vshrl.u32 %v2305, 7
        %v2307 = vsub.s32 %v1213, %v2306
        %v2308 = vrot.slane %v2143, %v2307
        %v2309 = vsel %vm1218, %v2308, %v2304
        %v2310 = vlaneseq
        %v2311 = vshrl.u32 %v2310, 7
        %v2312 = vsub.s32 %v1220, %v2311
        %v2313 = vrot.slane %v2146, %v2312
        %v2314 = vsel %vm1225, %v2313, %v2309
        %v2315 = vlaneseq
        %v2316 = vshrl.u32 %v2315, 7
        %v2317 = vsub.s32 %v1227, %v2316
        %v2318 = vrot.slane %v2149, %v2317
        %v2319 = vsel %vm1232, %v2318, %v2314
        %v2320 = vlaneseq
        %v2321 = vshrl.u32 %v2320, 7
        %v2322 = vsub.s32 %v1234, %v2321
        %v2323 = vrot.slane %v2152, %v2322
        %v2324 = vsel %vm1239, %v2323, %v2319
        %v2325 = vlaneseq
        %v2326 = vshrl.u32 %v2325, 7
        %v2327 = vsub.s32 %v1241, %v2326
        %v2328 = vrot.slane %v2155, %v2327
        %v2329 = vsel %vm1246, %v2328, %v2324
        %v2330 = vlaneseq
        %v2331 = vshrl.u32 %v2330, 7
        %v2332 = vsub.s32 %v1248, %v2331
        %v2333 = vrot.slane %v2158, %v2332
        %v2334 = vsel %vm1253, %v2333, %v2329
        %v2335 = vlaneseq
        %v2336 = vshrl.u32 %v2335, 7
        %v2337 = vsub.s32 %v1145, %v2336
        %v2338 = vrot.slane %v2161, %v2337
        %v2339 = vlaneseq
        %v2340 = vshrl.u32 %v2339, 7
        %v2341 = vsub.s32 %v1150, %v2340
        %v2342 = vrot.slane %v2164, %v2341
        %v2343 = vsel %vm1155, %v2342, %v2338
        %v2344 = vlaneseq
        %v2345 = vshrl.u32 %v2344, 7
        %v2346 = vsub.s32 %v1157, %v2345
        %v2347 = vrot.slane %v2167, %v2346
        %v2348 = vsel %vm1162, %v2347, %v2343
        %v2349 = vlaneseq
        %v2350 = vshrl.u32 %v2349, 7
        %v2351 = vsub.s32 %v1164, %v2350
        %v2352 = vrot.slane %v2170, %v2351
        %v2353 = vsel %vm1169, %v2352, %v2348
        %v2354 = vlaneseq
        %v2355 = vshrl.u32 %v2354, 7
        %v2356 = vsub.s32 %v1171, %v2355
        %v2357 = vrot.slane %v2173, %v2356
        %v2358 = vsel %vm1176, %v2357, %v2353
        %v2359 = vlaneseq
        %v2360 = vshrl.u32 %v2359, 7
        %v2361 = vsub.s32 %v1178, %v2360
        %v2362 = vrot.slane %v2176, %v2361
        %v2363 = vsel %vm1183, %v2362, %v2358
        %v2364 = vlaneseq
        %v2365 = vshrl.u32 %v2364, 7
        %v2366 = vsub.s32 %v1185, %v2365
        %v2367 = vrot.slane %v2179, %v2366
        %v2368 = vsel %vm1190, %v2367, %v2363
        %v2369 = vlaneseq
        %v2370 = vshrl.u32 %v2369, 7
        %v2371 = vsub.s32 %v1192, %v2370
        %v2372 = vrot.slane %v2182, %v2371
        %v2373 = vsel %vm1197, %v2372, %v2368
        %v2374 = vlaneseq
        %v2375 = vshrl.u32 %v2374, 7
        %v2376 = vsub.s32 %v1199, %v2375
        %v2377 = vrot.slane %v2185, %v2376
        %v2378 = vsel %vm1204, %v2377, %v2373
        %v2379 = vlaneseq
        %v2380 = vshrl.u32 %v2379, 7
        %v2381 = vsub.s32 %v1206, %v2380
        %v2382 = vrot.slane %v2188, %v2381
        %v2383 = vsel %vm1211, %v2382, %v2378
        %v2384 = vlaneseq
        %v2385 = vshrl.u32 %v2384, 7
        %v2386 = vsub.s32 %v1213, %v2385
        %v2387 = vrot.slane %v2191, %v2386
        %v2388 = vsel %vm1218, %v2387, %v2383
        %v2389 = vlaneseq
        %v2390 = vshrl.u32 %v2389, 7
        %v2391 = vsub.s32 %v1220, %v2390
        %v2392 = vrot.slane %v2194, %v2391
        %v2393 = vsel %vm1225, %v2392, %v2388
        %v2394 = vlaneseq
        %v2395 = vshrl.u32 %v2394, 7
        %v2396 = vsub.s32 %v1227, %v2395
        %v2397 = vrot.slane %v2197, %v2396
        %v2398 = vsel %vm1232, %v2397, %v2393
        %v2399 = vlaneseq
        %v2400 = vshrl.u32 %v2399, 7
        %v2401 = vsub.s32 %v1234, %v2400
        %v2402 = vrot.slane %v2200, %v2401
        %v2403 = vsel %vm1239, %v2402, %v2398
        %v2404 = vlaneseq
        %v2405 = vshrl.u32 %v2404, 7
        %v2406 = vsub.s32 %v1241, %v2405
        %v2407 = vrot.slane %v2203, %v2406
        %v2408 = vsel %vm1246, %v2407, %v2403
        %v2409 = vlaneseq
        %v2410 = vshrl.u32 %v2409, 7
        %v2411 = vsub.s32 %v1248, %v2410
        %v2412 = vrot.slane %v2206, %v2411
        %v2413 = vsel %vm1253, %v2412, %v2408
        %v2414 = vsel %vm1334, %v2413, %v2334
        %2416 = vmatprep.subr.mxu0 0.0
        %2417 = vmatpush1.msra.mxu0 %v2208
        %2418 = vmatprep.subr.mxu0 0.0
        %2419 = vmatpush1.msra.mxu0 %v2209
        %2420 = vmatprep.subr.mxu0 0.0
        %2421 = vmatpush1.msra.mxu0 %v2210
        %2422 = vmatprep.subr.mxu0 0.0
        %2423 = vmatpush1.msra.mxu0 %v2211
        %2424 = vmatprep.subr.mxu0 0.0
        %2425 = vmatpush1.msra.mxu0 %v2212
        %2426 = vmatprep.subr.mxu0 0.0
        %2427 = vmatpush1.msra.mxu0 %v2213
        %2428 = vmatprep.subr.mxu0 0.0
        %2429 = vmatpush1.msra.mxu0 %v2214
        %2430 = vmatprep.subr.mxu0 0.0
        %2431 = vmatpush1.msra.mxu0 %v2215
        %2432 = vmatprep.subr.mxu0 0.0
        %2433 = vmatpush1.msra.mxu0 %v2216
        %2434 = vmatprep.subr.mxu0 0.0
        %2435 = vmatpush1.msra.mxu0 %v2217
        %2436 = vmatprep.subr.mxu0 0.0
        %2437 = vmatpush1.msra.mxu0 %v2218
        %2438 = vmatprep.subr.mxu0 0.0
        %2439 = vmatpush1.msra.mxu0 %v2219
        %2440 = vmatprep.subr.mxu0 0.0
        %2441 = vmatpush1.msra.mxu0 %v2220
        %2442 = vmatprep.subr.mxu0 0.0
        %2443 = vmatpush1.msra.mxu0 %v2221
        %2444 = vmatprep.subr.mxu0 0.0
        %2445 = vmatpush1.msra.mxu0 %v2222
        %2446 = vmatprep.subr.mxu0 0.0
        %2447 = vmatpush1.msra.mxu0 %v2223
        %2448 = vmatprep.subr.mxu0 0.0
        %2449 = vmatpush1.msra.mxu0 0.0
        %2450 = vmatprep.subr.mxu0 0.0
        %2451 = vmatpush1.msra.mxu0 0.0
        %2452 = vmatprep.subr.mxu0 0.0
        %2453 = vmatpush1.msra.mxu0 0.0
        %2454 = vmatprep.subr.mxu0 0.0
        %2455 = vmatpush1.msra.mxu0 0.0
        %2456 = vmatprep.subr.mxu0 0.0
        %2457 = vmatpush1.msra.mxu0 0.0
        %2458 = vmatprep.subr.mxu0 0.0
        %2459 = vmatpush1.msra.mxu0 0.0
        %2460 = vmatprep.subr.mxu0 0.0
        %2461 = vmatpush1.msra.mxu0 0.0
        %2462 = vmatprep.subr.mxu0 0.0
        %2463 = vmatpush1.msra.mxu0 0.0
        %2464 = vmatprep.subr.mxu0 0.0
        %2465 = vmatpush1.msra.mxu0 0.0
        %2466 = vmatprep.subr.mxu0 0.0
        %2467 = vmatpush1.msra.mxu0 0.0
        %2468 = vmatprep.subr.mxu0 0.0
        %2469 = vmatpush1.msra.mxu0 0.0
        %2470 = vmatprep.subr.mxu0 0.0
        %2471 = vmatpush1.msra.mxu0 0.0
        %2472 = vmatprep.subr.mxu0 0.0
        %2473 = vmatpush1.msra.mxu0 0.0
        %2474 = vmatprep.subr.mxu0 0.0
        %2475 = vmatpush1.msra.mxu0 0.0
        %2476 = vmatprep.subr.mxu0 0.0
        %2477 = vmatpush1.msra.mxu0 0.0
        %2478 = vmatprep.subr.mxu0 0.0
        %2479 = vmatpush1.msra.mxu0 0.0
        %2480 = vmatprep.mubr.f32.mxu0 0.0
        %2481 = vmatmul.mubr.f32.gmra.mrb[0].mxu0 %v2414
        %v2482 = vpop.f32.mrb[0].mxu0
        %v2483 = vadd.f32 0.0, %v2482
        %v2484 = vpop.f32.mrb[0].mxu0
        %2485 = vdwg.mxu0
        %v2486 = vadd.f32 %v2077, %v2483
        %v2487 = vadd.f32 %v820, %v2486
        %vm2488 = vcmask 123904
        %2489 = vst.msk [vmem:[#allocation2] sm:$0x3] %vm2488, %v2487
        %p2490 = scmp.eq.s32.totalorder %s23, 3
        // Predicated region
        $region87: #{head_forward.1} parent=73 // pred_check
          %p2491 = pneg %p2490
        $region88: #{head_forward.1} parent=73 // pred_check_branch
          %2493 = sbr.rel (%p2491) target = $region90
        $region89: #{head_forward.1} parent=73 // pred_region
          %v2494 = vld [vmem:[#allocation2] sm:$0x3]
          %v2495 = vld [vmem:[%s2] sm:$0x1]
          %v2497 = vlaneseq
          %v2498 = vshrl.u32 %v2497, 7
          %v2499 = vsub.s32 0, %v2498
          %v2500 = vrot.slane %v2495, %v2499
          %v2502 = vadd.f32 %v2494, %v2500
          %s2503 = sld [smem:[#allocation4]]
          %s2504 = sld [smem:[#allocation4 + $0x1]]
          %s2505 = sld [smem:[#allocation4 + $0x2]]
          %s2506 = sld [smem:[#allocation4 + $0x3]]
          %v2507 = vstv %s2503
          %v2508 = vmul.f32 %v2502, %v2507
          %v2509 = vlaneseq
          %v2510 = vshrl.u32 %v2509, 7
          %v2511 = vsub.s32 0, %v2510
          %v2512 = vrot.slane %v2508, %v2511
          %2514 = vbcast.lane.b32.xlu0 %v2512, 256
          %v2515 = vpop.permute.xlu0 %2514
          %s2517 = sor.u32 256, 8
          %2518 = vbcast.lane.b32.xlu0 %v2512, %s2517
          %v2519 = vpop.permute.xlu0 %2518
          %v2520 = vlaneseq
          %v2521 = vshrl.u32 %v2520, 7
          %v2522 = vsub.s32 1, %v2521
          %v2523 = vrot.slane %v2508, %v2522
          %2525 = vbcast.lane.b32.xlu0 %v2523, 256
          %v2526 = vpop.permute.xlu0 %2525
          %s2528 = sor.u32 256, 8
          %2529 = vbcast.lane.b32.xlu0 %v2523, %s2528
          %v2530 = vpop.permute.xlu0 %2529
          %v2531 = vstv %s2504
          %v2532 = vmul.f32 %v2531, %v2515
          %v2533 = vmul.f32 %v2531, %v2519
          %v2534 = vmul.f32 %v2531, %v2526
          %v2535 = vmul.f32 %v2531, %v2530
          %v2538 = vunpack.c.l.s4 1966171168
          %v2539 = vunpack.c.0.s8 %v2538
          %v2540 = vlaneseq
          %v2541 = vshrl.u32 %v2540, 7
          %v2542 = vsub.s32 %v2539, %v2541
          %v2543 = vrot.slane %v2508, %v2542
          %v2544 = vcombine.high %v2543, %v2543
          %v2546 = vunpack.c.l.s4 1966171168
          %v2547 = vunpack.c.0.s8 %v2546
          %v2548 = vlaneseq
          %v2549 = vshrl.u32 %v2548, 7
          %v2550 = vsub.s32 %v2547, %v2549
          %v2551 = vrot.slane %v2543, %v2550
          %v2553 = vunpack.c.l.s4 1966171168
          %v2554 = vunpack.c.0.s8 %v2553
          %v2555 = vlaneseq
          %v2556 = vshrl.u32 %v2555, 7
          %v2557 = vsub.s32 %v2554, %v2556
          %v2558 = vrot.slane %v2544, %v2557
          %v2561 = vstv %s2505
          %v2562 = vmul.f32 %v2561, %v2551
          %v2563 = vmul.f32 %v2561, %v2558
          %v2566 = vlaneseq
          %v2567 = vshrl.u32 %v2566, 7
          %v2568 = vsub.s32 0, %v2567
          %v2569 = vrot.slane %v2562, %v2568
          %v2570 = vlaneseq
          %v2571 = vshrl.u32 %v2570, 7
          %v2572 = vsub.s32 0, %v2571
          %v2573 = vrot.slane %v2563, %v2572
          %v2576 = vadd.f32 %v2532, %v2569
          %v2577 = vadd.f32 %v2533, %v2569
          %v2578 = vadd.f32 %v2534, %v2573
          %v2579 = vadd.f32 %v2535, %v2573
          %vm2580 = vcmp.gt.f32.partialorder %v2576, 0.0
          %vm2581 = vcmp.gt.f32.partialorder %v2577, 0.0
          %vm2582 = vcmp.gt.f32.partialorder %v2578, 0.0
          %vm2583 = vcmp.gt.f32.partialorder %v2579, 0.0
          %v2584 = vmul.f32 %v2576, 0.2
          %v2585 = vmul.f32 %v2577, 0.2
          %v2586 = vmul.f32 %v2578, 0.2
          %v2587 = vmul.f32 %v2579, 0.2
          %v2588 = vsel %vm2580, %v2576, %v2584
          %v2589 = vsel %vm2581, %v2577, %v2585
          %v2590 = vsel %vm2582, %v2578, %v2586
          %v2591 = vsel %vm2583, %v2579, %v2587
          %v2592 = vld [vmem:[%s3] sm:$0xff]
          %v2593 = vld [vmem:[%s3 + $0x8] sm:$0xff]
          %v2594 = vmul.f32 %v2588, %v2592
          %v2595 = vmul.f32 %v2589, %v2593
          %v2596 = vmul.f32 %v2590, %v2592
          %v2597 = vmul.f32 %v2591, %v2593
          %v2598 = vsel %vm853, %v2594, -inf
          %2599 = vmax.xlane.f32.xlu0 %v2598
          %v2600 = vpop.xlane.xlu0 %2599
          %v2601 = vsel %vm853, %v2595, -inf
          %2602 = vmax.xlane.f32.xlu0 %v2601
          %v2603 = vpop.xlane.xlu0 %2602
          %v2604 = vsel %vm853, %v2596, -inf
          %2605 = vmax.xlane.f32.xlu0 %v2604
          %v2606 = vpop.xlane.xlu0 %2605
          %v2607 = vsel %vm853, %v2597, -inf
          %2608 = vmax.xlane.f32.xlu0 %v2607
          %v2609 = vpop.xlane.xlu0 %2608
          %v2610 = vsub.f32 %v2594, %v2600
          %v2611 = vsub.f32 %v2595, %v2603
          %v2612 = vsub.f32 %v2596, %v2606
          %v2613 = vsub.f32 %v2597, %v2609
          %v2614 = vmul.f32 %v2610, 1.442695
          %v2615 = vpow.pop %v2614
          %v2616 = vmul.f32 %v2611, 1.442695
          %v2617 = vpow.pop %v2616
          %v2618 = vmul.f32 %v2612, 1.442695
          %v2619 = vpow.pop %v2618
          %v2620 = vmul.f32 %v2613, 1.442695
          %v2621 = vpow.pop %v2620
          %v2622 = vsel %vm853, %v2615, 0.0
          %2623 = vadd.xlane.f32.xlu0 %v2622
          %v2624 = vpop.xlane.xlu0 %2623
          %v2625 = vsel %vm853, %v2617, 0.0
          %2626 = vadd.xlane.f32.xlu0 %v2625
          %v2627 = vpop.xlane.xlu0 %2626
          %v2628 = vsel %vm853, %v2619, 0.0
          %2629 = vadd.xlane.f32.xlu0 %v2628
          %v2630 = vpop.xlane.xlu0 %2629
          %v2631 = vsel %vm853, %v2621, 0.0
          %2632 = vadd.xlane.f32.xlu0 %v2631
          %v2633 = vpop.xlane.xlu0 %2632
          %v2634 = vrcp.pop %v2624
          %v2635 = vrcp.pop %v2627
          %v2636 = vrcp.pop %v2630
          %v2637 = vrcp.pop %v2633
          %v2638 = vmul.f32 %v2615, %v2634
          %v2639 = vmul.f32 %v2617, %v2635
          %v2640 = vmul.f32 %v2619, %v2636
          %v2641 = vmul.f32 %v2621, %v2637
          %v2642 = vlaneseq
          %v2643 = vshrl.u32 %v2642, 7
          %v2644 = vsub.s32 0, %v2643
          %v2645 = vrot.slane %v2551, %v2644
          %v2646 = vlaneseq
          %v2647 = vshrl.u32 %v2646, 7
          %v2648 = vsub.s32 0, %v2647
          %v2649 = vrot.slane %v2558, %v2648
          %v2652 = vmul.f32 %v2638, %v2645
          %v2653 = vmul.f32 %v2639, %v2645
          %v2654 = vmul.f32 %v2640, %v2649
          %v2655 = vmul.f32 %v2641, %v2649
          %v2656 = vsel %vm853, %v2652, 0.0
          %2657 = vadd.xlane.f32.xlu0 %v2656
          %v2658 = vpop.xlane.xlu0 %2657
          %v2659 = vsel %vm853, %v2653, 0.0
          %2660 = vadd.xlane.f32.xlu0 %v2659
          %v2661 = vpop.xlane.xlu0 %2660
          %v2662 = vsel %vm853, %v2654, 0.0
          %2663 = vadd.xlane.f32.xlu0 %v2662
          %v2664 = vpop.xlane.xlu0 %2663
          %v2665 = vsel %vm853, %v2655, 0.0
          %2666 = vadd.xlane.f32.xlu0 %v2665
          %v2667 = vpop.xlane.xlu0 %2666
          %v2668 = vstv %s2506
          %v2669 = vmul.f32 %v2668, %v2508
          %v2671 = vlaneseq
          %v2672 = vshrl.u32 %v2671, 7
          %v2673 = vsub.s32 0, %v2672
          %v2674 = vrot.slane %v2669, %v2673
          %2676 = vbcast.lane.b32.xlu0 %v2674, 256
          %v2677 = vpop.permute.xlu0 %2676
          %s2679 = sor.u32 256, 8
          %2680 = vbcast.lane.b32.xlu0 %v2674, %s2679
          %v2681 = vpop.permute.xlu0 %2680
          %v2682 = vlaneseq
          %v2683 = vshrl.u32 %v2682, 7
          %v2684 = vsub.s32 1, %v2683
          %v2685 = vrot.slane %v2669, %v2684
          %2687 = vbcast.lane.b32.xlu0 %v2685, 256
          %v2688 = vpop.permute.xlu0 %2687
          %s2690 = sor.u32 256, 8
          %2691 = vbcast.lane.b32.xlu0 %v2685, %s2690
          %v2692 = vpop.permute.xlu0 %2691
          %v2697 = vadd.f32 %v2658, %v2677
          %v2698 = vadd.f32 %v2661, %v2681
          %v2699 = vadd.f32 %v2664, %v2688
          %v2700 = vadd.f32 %v2667, %v2692
          %vm2701 = vcmp.gt.f32.partialorder %v2697, 0.0
          %vm2702 = vcmp.gt.f32.partialorder %v2698, 0.0
          %vm2703 = vcmp.gt.f32.partialorder %v2699, 0.0
          %vm2704 = vcmp.gt.f32.partialorder %v2700, 0.0
          %v2705 = vmin.f32 %v2697, 0.0
          %v2706 = vmin.f32 %v2698, 0.0
          %v2707 = vmin.f32 %v2699, 0.0
          %v2708 = vmin.f32 %v2700, 0.0
          %v2709 = vmul.f32 %v2705, 1.442695
          %v2710 = vpow.pop %v2709
          %v2711 = vmul.f32 %v2706, 1.442695
          %v2712 = vpow.pop %v2711
          %v2713 = vmul.f32 %v2707, 1.442695
          %v2714 = vpow.pop %v2713
          %v2715 = vmul.f32 %v2708, 1.442695
          %v2716 = vpow.pop %v2715
          %v2717 = vsub.f32 %v2710, 1.0
          %v2718 = vsub.f32 %v2712, 1.0
          %v2719 = vsub.f32 %v2714, 1.0
          %v2720 = vsub.f32 %v2716, 1.0
          %v2721 = vsel %vm2701, %v2697, %v2717
          %v2722 = vsel %vm2702, %v2698, %v2718
          %v2723 = vsel %vm2703, %v2699, %v2719
          %v2724 = vsel %vm2704, %v2700, %v2720
          %2729 = vset.pattern.permute.xlu0 0
          %2730 = vperm.xlu0 %2729, %v2721
          %v2731 = vpop.permute.xlu0 %2730
          %2732 = vset.pattern.permute.xlu0 0
          %2733 = vperm.xlu0 %2732, %v2722
          %v2734 = vpop.permute.xlu0 %2733
          %2735 = vset.pattern.permute.xlu0 0
          %2736 = vperm.xlu0 %2735, %v2723
          %v2737 = vpop.permute.xlu0 %2736
          %2738 = vset.pattern.permute.xlu0 0
          %2739 = vperm.xlu0 %2738, %v2724
          %v2740 = vpop.permute.xlu0 %2739
          %v2741 = vlaneseq
          %v2742 = vshrl.u32 %v2741, 7
          %v2743 = vsub.s32 %v1145, %v2742
          %v2744 = vrot.slane %v2731, %v2743
          %v2745 = vlaneseq
          %v2746 = vshrl.u32 %v2745, 7
          %v2747 = vsub.s32 %v1150, %v2746
          %v2748 = vrot.slane %v2734, %v2747
          %v2749 = vsel %vm1155, %v2748, %v2744
          %v2750 = vlaneseq
          %v2751 = vshrl.u32 %v2750, 7
          %v2752 = vsub.s32 %v1145, %v2751
          %v2753 = vrot.slane %v2737, %v2752
          %v2754 = vlaneseq
          %v2755 = vshrl.u32 %v2754, 7
          %v2756 = vsub.s32 %v1150, %v2755
          %v2757 = vrot.slane %v2740, %v2756
          %v2758 = vsel %vm1155, %v2757, %v2753
          %v2759 = vsel %vm1334, %v2758, %v2749
          %v2761 = vadd.f32 %v2502, %v2759
          %2762 = vst.msk [vmem:[#allocation7] sm:$0x3] %vm2488, %v2761
        $region90: #{head_forward.1} parent=73 // pred_fallthru
          _
        // Predicated region
        $region91: #{head_forward.1} parent=73 // pred_check
          %p2763 = pneg %p165
        $region92: #{head_forward.1} parent=73 // pred_check_branch
          %2765 = sbr.rel (%p2763) target = $region94
        $region93: #{head_forward.1} parent=73 // pred_region
          %s2767 = ssub.s32 32, 32
          %2768 = vsyncadd [#allocation5], %s2767
          %s2769 = smul.addr %s22, 32
          %s2770 = scalar_lea.hbm %s5, %s2769
          %s2772 = sshll.u32 [#allocation7], 4
          %s2773 = int_to_ptr.vmem [resolvable:$true] %s2772
          %2775 = dma.vmem_to_hbm [thread:$0]  %s2773, 32, %s2770, [#allocation5]
        $region94: #{head_forward.1} parent=73 // pred_fallthru
          _
        // Predicated region
        $region95: #{head_forward.1} parent=73 // pred_check
          %p2776 = pneg %p165
        $region96: #{head_forward.1} parent=73 // pred_check_branch
          %2778 = sbr.rel (%p2776) target = $region98
        $region97: #{head_forward.1} parent=73 // pred_region
          %2779 = dma.done [#allocation5], 32
        $region98: #{head_forward.1} parent=73 // pred_fallthru
          _
      $region74: #{head_forward.1} parent=5 // pred_fallthru
        _
      %p2780 = scmp.le.s32.totalorder 2, %s13
      // Predicated region
      $region99: #{head_forward.1} parent=5 // pred_check
        %p2781 = pneg %p2780
      $region100: #{head_forward.1} parent=5 // pred_check_branch
        %2783 = sbr.rel (%p2781) target = $region102
      $region101: #{head_forward.1} parent=5 // pred_region
        %s2784 = ssub.s32 %s13, 2
      $region102: #{head_forward.1} parent=5 // pred_fallthru
        _
    $region6: #{head_forward.1} parent=1 // loop_footer
      %s17 = sadd.s32 1, %s13
    $region7: #{head_forward.1} parent=1 // loop_footer_branch
      %12 = sbr.rel target = $region3
    $region8: #{head_forward.1} parent=1 // loop_exit
      _
    %2785 = vsyncpa [#allocation5], 1
    %s2786 = scalar_lea.sflag [#allocation5], 1
    %2787 = vsyncpa %s2786, 1
    %2788 = vsyncpa [#allocation6], 1
    %s2789 = scalar_lea.sflag [#allocation6], 1
    %2790 = vsyncpa %s2789, 1

</llo_original>
